<compile_context>
chip_gen: v5e
topology: v5e:2x2
jax: 0.10.0
libtpu: 0.0.40
codegen_flags: <defaults>
</compile_context>

<pallas_src>
import functools
import inspect

import jax
import jax.numpy as jnp
from jax.experimental import pallas as pl
from jax.experimental.pallas import tpu as pltpu


def _round_up(n, m):
    return (n + m - 1) // m * m


def _tpu_num_tensorcores():
    """2 on chips that expose two TensorCores per device (v7x); else 1."""
    try:
        kind = jax.devices()[0].device_kind.lower()
    except Exception:
        return 1
    return 2 if "v7" in kind else 1


def _vmem_capacity_bytes():
    """Physical VMEM per core (64 MiB v7x, 128 MiB v5e/v6e); safe fallback."""
    try:
        return int(pltpu.get_tpu_info().vmem_capacity_bytes)
    except Exception:
        return 128 * 2 ** 20


try:
    _HAS_SINGLE_BUFFER = (
        "pipeline_mode" in inspect.signature(pl.BlockSpec).parameters
        and hasattr(pl, "Buffered"))
except (ValueError, TypeError):
    _HAS_SINGLE_BUFFER = False


def _const_spec(block_shape):
    """BlockSpec for a grid-invariant operand (weights / biases).

    The block index never changes across the grid, so request a single
    pipeline buffer when the API supports it (saves resident VMEM)."""
    idx = lambda b, t: (0, 0)
    if _HAS_SINGLE_BUFFER:
        return pl.BlockSpec(block_shape, idx, pipeline_mode=pl.Buffered(1))
    return pl.BlockSpec(block_shape, idx)


def _lstm_fc_kernel(seq_len, x_ref, wih_ref, whh_ref, b_ref, wfc_ref, bfc_ref,
                    out_ref, h_ref, c_ref, gx_ref):
    """One (batch-block, time-block) grid step of the LSTM + final FC.

    x_ref   : (Tt*Bb, D)    mxu dtype, time-major within the block
    wih_ref : (D, 4*Hp)     mxu dtype (weight_ih^T, gate order i,f,o,g, padded)
    whh_ref : (Hp, 4*Hp)    mxu dtype (weight_hh^T, padded)
    b_ref   : (1, 4*Hp)     f32       (bias_ih + bias_hh, padded)
    wfc_ref : (1, Hp)       f32       (fc.weight, padded)
    bfc_ref : (1, 1)        f32       (fc.bias)
    out_ref : (Bb, 1)       f32
    h_ref/c_ref : (Bb, Hp)  f32 VMEM scratch, persisted across time-blocks
    gx_ref  : (Tt*Bb, 4*Hp) f32 VMEM scratch for the hoisted input projection
    """
    t = pl.program_id(1)

    @pl.when(t == 0)
    def _init():
        h_ref[...] = jnp.zeros_like(h_ref)
        c_ref[...] = jnp.zeros_like(c_ref)

    Bb, Hp = h_ref.shape
    Tt = gx_ref.shape[0] // Bb
    d_in = x_ref.shape[1]
    mxu_dt = whh_ref.dtype

    # ---- hoisted input projection for the whole time-block (off the serial
    # critical path), staged in VMEM scratch to keep vreg pressure low inside
    # the unrolled recurrence.
    if d_in <= 8:
        # K=d_in GEMM would run the MXU at ~d_in/128 utilization; a few
        # broadcast FMAs on the VPU are cheaper and keep the MXU slot free.
        x_f = x_ref[...].astype(jnp.float32)
        w_f = wih_ref[...].astype(jnp.float32)
        acc = x_f[:, 0:1] * w_f[0:1, :] + b_ref[...]
        for d in range(1, d_in):
            acc = acc + x_f[:, d:d + 1] * w_f[d:d + 1, :]
        gx_ref[...] = acc
    else:
        gx_ref[...] = (jnp.dot(x_ref[...], wih_ref[...],
                               preferred_element_type=jnp.float32) + b_ref[...])

    h = h_ref[...]
    c = c_ref[...]

    # Tail-step masking: only the last time-block can contain padded steps,
    # and only step indices j >= last_valid can ever be padded (static ints).
    nt_static = -(-seq_len // Tt)
    last_valid = seq_len - (nt_static - 1) * Tt

    # Serial recurrence, fully unrolled inside the block (Tt small & static);
    # the grid over time-blocks bounds the unroll / live ranges.
    for j in range(Tt):
        gates = (gx_ref[pl.ds(j * Bb, Bb), :]
                 + jnp.dot(h.astype(mxu_dt), whh_ref[...],
                           preferred_element_type=jnp.float32))       # (Bb, 4Hp) f32
        sig = jax.nn.sigmoid(gates[:, 0:3 * Hp])        # i, f, o in ONE EUP pass
        i_g = sig[:, 0 * Hp:1 * Hp]
        f_g = sig[:, 1 * Hp:2 * Hp]
        o_g = sig[:, 2 * Hp:3 * Hp]
        g_g = jnp.tanh(gates[:, 3 * Hp:4 * Hp])
        c_new = f_g * c + i_g * g_g
        h_new = o_g * jnp.tanh(c_new)
        if j >= last_valid:
            # Possible padded tail step: arithmetic mask (scalar broadcast).
            m = ((t * Tt + j) < seq_len).astype(jnp.float32)
            c = c_new * m + c * (1.0 - m)
            h = h_new * m + h * (1.0 - m)
        else:
            c, h = c_new, h_new

    h_ref[...] = h
    c_ref[...] = c

    @pl.when(t == pl.num_programs(1) - 1)
    def _finalize():
        # Dropout: identity (inference / eval mode).
        # Linear(H,1) as VPU multiply + cross-lane reduce (no N=1 MXU matmul).
        out_ref[...] = (jnp.sum(h * wfc_ref[...], axis=-1, keepdims=True)
                        + bfc_ref[...])


def lstm_predictor_forward(x, params, *, mxu_dtype=jnp.bfloat16,
                           t_block=None, batch_block=None):
    """Forward pass of LSTMPredictor.  x: (B, T, D) float32 (batch_first).

    mxu_dtype: dtype of the MXU operands (x, W_ih, W_hh, h).  bf16 (default)
    is MXU-native on v5e/v6e/v7x and halves weight VMEM/DMA, but also
    quantizes x; use jnp.float32 for tighter numerics."""
    B, T, D = x.shape
    w_ih, w_hh = params["w_ih"], params["w_hh"]      # (4H, D), (4H, H)
    b_ih, b_hh = params["b_ih"], params["b_hh"]      # (4H,), (4H,)
    w_fc, b_fc = params["w_fc"], params["b_fc"]      # (1, H), (1,)
    H = w_hh.shape[1]
    Hp = _round_up(H, 128)

    # ---- block sizes / grid --------------------------------------------------
    # Batch: split into 2 blocks only when the chip has 2 TensorCores (v7x);
    # on single-TC v5e/v6e splitting the batch just repeats the recurrence.
    if batch_block is None:
        nb_target = 2 if (_tpu_num_tensorcores() >= 2 and B > 8) else 1
        Bp = _round_up(B, 8 * nb_target)
        batch_block = Bp // nb_target
    else:
        assert batch_block % 8 == 0
        Bp = _round_up(B, batch_block)
    Bb = batch_block
    nb = Bp // Bb

    # Time: larger blocks amortize the ~0.35us grid-step overhead, the x DMA
    # and the hoisted input GEMM; awkward T is padded and tail-masked in-kernel.
    if t_block is None:
        t_block = min(T, 16)
    Tt = t_block
    nt = -(-T // Tt)
    T_pad = nt * Tt

    # ---- lane/sublane padding + gate reorder (i,f,g,o) -> (i,f,o,g).
    # Zero-padded hidden units keep h = c = 0 forever, so results are unchanged.
    GATE_ORDER = [0, 1, 3, 2]

    def pad_gates(w):                                  # (4H, X) -> (4Hp, X)
        w4 = w.reshape(4, H, -1)[jnp.array(GATE_ORDER)]
        return jnp.pad(w4, ((0, 0), (0, Hp - H), (0, 0))).reshape(4 * Hp, -1)

    wih_t = pad_gates(w_ih).T.astype(mxu_dtype)                                  # (D, 4Hp)
    whh_t = pad_gates(jnp.pad(w_hh, ((0, 0), (0, Hp - H)))).T.astype(mxu_dtype)  # (Hp, 4Hp)
    b_row = pad_gates(b_ih + b_hh).reshape(1, 4 * Hp).astype(jnp.float32)        # (1, 4Hp)
    wfc_row = jnp.pad(w_fc, ((0, 0), (0, Hp - H))).astype(jnp.float32)           # (1, Hp)
    bfc_11 = b_fc.reshape(1, 1).astype(jnp.float32)                              # (1, 1)

    # ---- x re-layout: cast once to mxu_dtype, then pad/transpose (one pass),
    # (B,T,D) -> (nt, nb, Tt*Bb, D), time-major within each block so each grid
    # step DMAs one contiguous slab and per-step row slices are sublane-aligned.
    x_p = jnp.pad(x.astype(mxu_dtype), ((0, Bp - B), (0, T_pad - T), (0, 0)))
    x_blk = (x_p.transpose(1, 0, 2)                    # (T_pad, Bp, D)
             .reshape(nt, Tt, nb, Bb, D)
             .transpose(0, 2, 1, 3, 4)
             .reshape(nt, nb, Tt * Bb, D))
    # TODO(synk): for very large B*T*D, index the original (Bp, T, D) layout
    # with a (Bb, Tt, D) BlockSpec instead of materializing this 4-D copy.

    # ---- VMEM budget, clamped to ~90% of the chip's physical VMEM.
    mxu_bytes = jnp.dtype(mxu_dtype).itemsize
    d_lanes = _round_up(D, 128)                        # real lane-tile footprint of D
    est = (2 * Tt * Bb * d_lanes * mxu_bytes           # x block (double-buffered)
           + (d_lanes + Hp) * 4 * Hp * mxu_bytes       # W_ih + W_hh (single-buffered)
           + (4 * Hp + Hp + 128) * 4                   # biases + fc weight/bias
           + 2 * Bb * Hp * 4                           # h/c carries
           + Tt * Bb * 4 * Hp * 4                      # gx scratch
           + 8 * Bb * 4 * Hp * 4)                      # per-step temporaries slack
    vmem_cap = _vmem_capacity_bytes()
    vmem_limit = int(min(int(0.9 * vmem_cap), max(32 * 2 ** 20, 2 * est)))

    kernel = functools.partial(_lstm_fc_kernel, T)

    out = pl.pallas_call(
        kernel,
        out_shape=jax.ShapeDtypeStruct((Bp, 1), jnp.float32),
        grid=(nb, nt),
        in_specs=[
            pl.BlockSpec((None, None, Tt * Bb, D), lambda b, t: (t, b, 0, 0)),  # x stream
            _const_spec((D, 4 * Hp)),                                           # W_ih^T
            _const_spec((Hp, 4 * Hp)),                                          # W_hh^T
            _const_spec((1, 4 * Hp)),                                           # bias
            _const_spec((1, Hp)),                                               # fc.weight
            _const_spec((1, 1)),                                                # fc.bias
        ],
        out_specs=pl.BlockSpec((Bb, 1), lambda b, t: (b, 0)),
        scratch_shapes=[pltpu.VMEM((Bb, Hp), jnp.float32),            # h carry
                        pltpu.VMEM((Bb, Hp), jnp.float32),            # c carry
                        pltpu.VMEM((Tt * Bb, 4 * Hp), jnp.float32)],  # gx staging
        compiler_params=pltpu.CompilerParams(
            dimension_semantics=("parallel", "arbitrary"),
            vmem_limit_bytes=vmem_limit),
    )(x_blk, wih_t, whh_t, b_row, wfc_row, bfc_11)
    return out[:B]


def _reference_forward(x, params):
    """Pure-JAX reference implementing PyTorch nn.LSTM + Linear (eval) semantics."""
    hi = jax.lax.Precision.HIGHEST
    w_ih, w_hh = params["w_ih"], params["w_hh"]
    b_ih, b_hh = params["b_ih"], params["b_hh"]
    w_fc, b_fc = params["w_fc"], params["b_fc"]
    B, T, D = x.shape
    H = w_hh.shape[1]
    h = jnp.zeros((B, H), jnp.float32)
    c = jnp.zeros((B, H), jnp.float32)
    for t in range(T):
        gates = (jnp.dot(x[:, t, :], w_ih.T, precision=hi) + b_ih
                 + jnp.dot(h, w_hh.T, precision=hi) + b_hh)
        i = jax.nn.sigmoid(gates[:, 0:H])
        f = jax.nn.sigmoid(gates[:, H:2 * H])
        g = jnp.tanh(gates[:, 2 * H:3 * H])
        o = jax.nn.sigmoid(gates[:, 3 * H:4 * H])
        c = f * c + i * g
        h = o * jnp.tanh(c)
    return jnp.dot(h, w_fc.T, precision=hi) + b_fc


def init_params(key, input_size, hidden_size):
    """Deterministic init mimicking PyTorch's U(-1/sqrt(H), 1/sqrt(H))."""
    k = 1.0 / jnp.sqrt(hidden_size)
    keys = jax.random.split(key, 6)
    return {
        "w_ih": jax.random.uniform(keys[0], (4 * hidden_size, input_size), jnp.float32, -k, k),
        "w_hh": jax.random.uniform(keys[1], (4 * hidden_size, hidden_size), jnp.float32, -k, k),
        "b_ih": jax.random.uniform(keys[2], (4 * hidden_size,), jnp.float32, -k, k),
        "b_hh": jax.random.uniform(keys[3], (4 * hidden_size,), jnp.float32, -k, k),
        "w_fc": jax.random.uniform(keys[4], (1, hidden_size), jnp.float32, -k, k),
        "b_fc": jax.random.uniform(keys[5], (1,), jnp.float32, -k, k),
    }


if __name__ == "__main__":
    key = jax.random.PRNGKey(0)
    kx, kp, kx2 = jax.random.split(key, 3)

    # Small shapes consistent with the module: batch=2, seq=8, input=4, hidden=32.
    B, T, D, H = 2, 8, 4, 32
    x = jax.random.normal(kx, (B, T, D), jnp.float32)
    params = init_params(kp, D, H)

    # f32-operand path; t_block=5 -> 2 time-blocks incl. a masked tail block,
    # exercising the h/c VMEM carry across grid steps and the awkward-T path.
    # Tolerance allows for the MXU's internal bf16-pass decomposition of f32.
    out = jax.block_until_ready(
        lstm_predictor_forward(x, params, mxu_dtype=jnp.float32, t_block=5))
    ref = _reference_forward(x, params)
    assert out.shape == (B, 1)
    assert jnp.allclose(out, ref, rtol=2e-3, atol=2e-3)

    # Default bf16 MXU path (native on v5e/v6e/v7x) with a bigger batch and a
    # prime sequence length (tail masking); on v7x the batch is split across
    # both TensorCores.  bf16 quantizes x too -> looser tolerance.
    B2, T2 = 16, 19
    x2 = jax.random.normal(kx2, (B2, T2, D), jnp.float32)
    out2 = jax.block_until_ready(lstm_predictor_forward(x2, params))
    ref2 = _reference_forward(x2, params)
    assert out2.shape == (B2, 1)
    assert jnp.allclose(out2, ref2, rtol=5e-2, atol=1e-1)

    print("KERNEL_OK")
</pallas_src>

<mosaic_0001>
module attributes {stable_mosaic.version = 11 : i64} {
  func.func @_lstm_fc_kernel(%arg0: i32, %arg1: i32, %arg2: memref<1x1x40x4xf32, #tpu.memory_space<vmem>>, %arg3: memref<4x512xf32, #tpu.memory_space<vmem>>, %arg4: memref<128x512xf32, #tpu.memory_space<vmem>>, %arg5: memref<1x512xf32, #tpu.memory_space<vmem>>, %arg6: memref<1x128xf32, #tpu.memory_space<vmem>>, %arg7: memref<1x1xf32, #tpu.memory_space<vmem>>, %arg8: memref<8x1xf32, #tpu.memory_space<vmem>>, %arg9: memref<8x128xf32, #tpu.memory_space<vmem>>, %arg10: memref<8x128xf32, #tpu.memory_space<vmem>>, %arg11: memref<40x512xf32, #tpu.memory_space<vmem>>) attributes {dimension_semantics = [#tpu.dimension_semantics<parallel>, #tpu.dimension_semantics<arbitrary>], iteration_bounds = array<i64: 1, 2>, scalar_prefetch = 0 : i64, scratch_operands = 3 : i64, tpu.core_type = #tpu.core_type<tc>, window_params = [{transform_indices = @transform_0, window_bounds = array<i64: 1, 1, 40, 4>}, {pipeline_mode = #tpu.pipeline_mode<synchronous>, transform_indices = @transform_1, window_bounds = array<i64: 4, 512>}, {pipeline_mode = #tpu.pipeline_mode<synchronous>, transform_indices = @transform_2, window_bounds = array<i64: 128, 512>}, {pipeline_mode = #tpu.pipeline_mode<synchronous>, transform_indices = @transform_3, window_bounds = array<i64: 1, 512>}, {pipeline_mode = #tpu.pipeline_mode<synchronous>, transform_indices = @transform_4, window_bounds = array<i64: 1, 128>}, {pipeline_mode = #tpu.pipeline_mode<synchronous>, transform_indices = @transform_5, window_bounds = array<i64: 1, 1>}, {transform_indices = @transform_6, window_bounds = array<i64: 8, 1>}]} {
    %c0_i32 = arith.constant 0 : i32
    %0 = arith.cmpi eq, %arg1, %c0_i32 : i32
    %1 = arith.extui %0 : i1 to i32
    %c0_i32_0 = arith.constant 0 : i32
    %2 = arith.cmpi ne, %1, %c0_i32_0 : i32
    scf.if %2 {
      %cst_50 = arith.constant 0.000000e+00 : f32
      %174 = vector.broadcast %cst_50 : f32 to vector<8x128xf32>
      %c0_51 = arith.constant 0 : index
      %c0_52 = arith.constant 0 : index
      %175 = vector.load %arg9[%c0_51, %c0_52] : memref<8x128xf32, #tpu.memory_space<vmem>>, vector<8x128xf32>
      tpu.vector_store %arg9[%c0_51, %c0_52], %174 {strides = array<i32>} : memref<8x128xf32, #tpu.memory_space<vmem>>, vector<8x128xf32>,
      %cst_53 = arith.constant 0.000000e+00 : f32
      %176 = vector.broadcast %cst_53 : f32 to vector<8x128xf32>
      %c0_54 = arith.constant 0 : index
      %c0_55 = arith.constant 0 : index
      %177 = vector.load %arg10[%c0_54, %c0_55] : memref<8x128xf32, #tpu.memory_space<vmem>>, vector<8x128xf32>
      tpu.vector_store %arg10[%c0_54, %c0_55], %176 {strides = array<i32>} : memref<8x128xf32, #tpu.memory_space<vmem>>, vector<8x128xf32>,
    } else {
    }
    %c0 = arith.constant 0 : index
    %c0_1 = arith.constant 0 : index
    %c0_2 = arith.constant 0 : index
    %c0_3 = arith.constant 0 : index
    %3 = vector.load %arg2[%c0, %c0_1, %c0_2, %c0_3] : memref<1x1x40x4xf32, #tpu.memory_space<vmem>>, vector<1x1x40x4xf32>
    %4 = vector.shape_cast %3 : vector<1x1x40x4xf32> to vector<40x4xf32>
    %c0_4 = arith.constant 0 : index
    %c0_5 = arith.constant 0 : index
    %5 = vector.load %arg3[%c0_4, %c0_5] : memref<4x512xf32, #tpu.memory_space<vmem>>, vector<4x512xf32>
    %6 = vector.extract_strided_slice %4 {offsets = [0, 0], sizes = [40, 1], strides = [1, 1]} : vector<40x4xf32> to vector<40x1xf32>
    %7 = vector.extract_strided_slice %5 {offsets = [0, 0], sizes = [1, 512], strides = [1, 1]} : vector<4x512xf32> to vector<1x512xf32>
    %8 = vector.broadcast %6 : vector<40x1xf32> to vector<40x512xf32>
    %9 = vector.broadcast %7 : vector<1x512xf32> to vector<40x512xf32>
    %10 = arith.mulf %8, %9 : vector<40x512xf32>
    %c0_6 = arith.constant 0 : index
    %c0_7 = arith.constant 0 : index
    %11 = vector.load %arg5[%c0_6, %c0_7] : memref<1x512xf32, #tpu.memory_space<vmem>>, vector<1x512xf32>
    %12 = vector.broadcast %11 : vector<1x512xf32> to vector<40x512xf32>
    %13 = arith.addf %10, %12 : vector<40x512xf32>
    %14 = vector.extract_strided_slice %4 {offsets = [0, 1], sizes = [40, 1], strides = [1, 1]} : vector<40x4xf32> to vector<40x1xf32>
    %15 = vector.extract_strided_slice %5 {offsets = [1, 0], sizes = [1, 512], strides = [1, 1]} : vector<4x512xf32> to vector<1x512xf32>
    %16 = vector.broadcast %14 : vector<40x1xf32> to vector<40x512xf32>
    %17 = vector.broadcast %15 : vector<1x512xf32> to vector<40x512xf32>
    %18 = arith.mulf %16, %17 : vector<40x512xf32>
    %19 = arith.addf %13, %18 : vector<40x512xf32>
    %20 = vector.extract_strided_slice %4 {offsets = [0, 2], sizes = [40, 1], strides = [1, 1]} : vector<40x4xf32> to vector<40x1xf32>
    %21 = vector.extract_strided_slice %5 {offsets = [2, 0], sizes = [1, 512], strides = [1, 1]} : vector<4x512xf32> to vector<1x512xf32>
    %22 = vector.broadcast %20 : vector<40x1xf32> to vector<40x512xf32>
    %23 = vector.broadcast %21 : vector<1x512xf32> to vector<40x512xf32>
    %24 = arith.mulf %22, %23 : vector<40x512xf32>
    %25 = arith.addf %19, %24 : vector<40x512xf32>
    %26 = vector.extract_strided_slice %4 {offsets = [0, 3], sizes = [40, 1], strides = [1, 1]} : vector<40x4xf32> to vector<40x1xf32>
    %27 = vector.extract_strided_slice %5 {offsets = [3, 0], sizes = [1, 512], strides = [1, 1]} : vector<4x512xf32> to vector<1x512xf32>
    %28 = vector.broadcast %26 : vector<40x1xf32> to vector<40x512xf32>
    %29 = vector.broadcast %27 : vector<1x512xf32> to vector<40x512xf32>
    %30 = arith.mulf %28, %29 : vector<40x512xf32>
    %31 = arith.addf %25, %30 : vector<40x512xf32>
    %c0_8 = arith.constant 0 : index
    %c0_9 = arith.constant 0 : index
    %32 = vector.load %arg11[%c0_8, %c0_9] : memref<40x512xf32, #tpu.memory_space<vmem>>, vector<40x512xf32>
    tpu.vector_store %arg11[%c0_8, %c0_9], %31 {strides = array<i32>} : memref<40x512xf32, #tpu.memory_space<vmem>>, vector<40x512xf32>,
    %c0_10 = arith.constant 0 : index
    %c0_11 = arith.constant 0 : index
    %33 = vector.load %arg9[%c0_10, %c0_11] : memref<8x128xf32, #tpu.memory_space<vmem>>, vector<8x128xf32>
    %c0_12 = arith.constant 0 : index
    %c0_13 = arith.constant 0 : index
    %34 = vector.load %arg10[%c0_12, %c0_13] : memref<8x128xf32, #tpu.memory_space<vmem>>, vector<8x128xf32>
    %c0_14 = arith.constant 0 : index
    %c0_15 = arith.constant 0 : index
    %35 = vector.load %arg11[%c0_14, %c0_15] : memref<40x512xf32, #tpu.memory_space<vmem>>, vector<8x512xf32>
    %c0_16 = arith.constant 0 : index
    %c0_17 = arith.constant 0 : index
    %36 = vector.load %arg4[%c0_16, %c0_17] : memref<128x512xf32, #tpu.memory_space<vmem>>, vector<128x512xf32>
    %cst = arith.constant dense<0.000000e+00> : vector<8x512xf32>
    %37 = tpu.matmul %33, %36, %cst {dimension_numbers = #tpu.dot_dimension_numbers<[1], [0], [0], [1], [0, 0, 1, 1], [], []>} : vector<8x128xf32>, vector<128x512xf32>, vector<8x512xf32> -> vector<8x512xf32>
    %38 = arith.addf %35, %37 : vector<8x512xf32>
    %39 = vector.extract_strided_slice %38 {offsets = [0, 0], sizes = [8, 384], strides = [1, 1]} : vector<8x512xf32> to vector<8x384xf32>
    %40 = arith.negf %39 : vector<8x384xf32>
    %41 = math.exp %40 : vector<8x384xf32>
    %cst_18 = arith.constant 1.000000e+00 : f32
    %42 = vector.broadcast %cst_18 : f32 to vector<8x384xf32>
    %43 = arith.addf %42, %41 : vector<8x384xf32>
    %44 = arith.divf %42, %43 : vector<8x384xf32>
    %45 = vector.extract_strided_slice %44 {offsets = [0, 0], sizes = [8, 128], strides = [1, 1]} : vector<8x384xf32> to vector<8x128xf32>
    %46 = vector.extract_strided_slice %44 {offsets = [0, 128], sizes = [8, 128], strides = [1, 1]} : vector<8x384xf32> to vector<8x128xf32>
    %47 = vector.extract_strided_slice %44 {offsets = [0, 256], sizes = [8, 128], strides = [1, 1]} : vector<8x384xf32> to vector<8x128xf32>
    %48 = vector.extract_strided_slice %38 {offsets = [0, 384], sizes = [8, 128], strides = [1, 1]} : vector<8x512xf32> to vector<8x128xf32>
    %49 = math.tanh %48 : vector<8x128xf32>
    %50 = arith.mulf %46, %34 : vector<8x128xf32>
    %51 = arith.mulf %45, %49 : vector<8x128xf32>
    %52 = arith.addf %50, %51 : vector<8x128xf32>
    %53 = math.tanh %52 : vector<8x128xf32>
    %54 = arith.mulf %47, %53 : vector<8x128xf32>
    %c8 = arith.constant 8 : index
    %c0_19 = arith.constant 0 : index
    %55 = vector.load %arg11[%c8, %c0_19] : memref<40x512xf32, #tpu.memory_space<vmem>>, vector<8x512xf32>
    %c0_20 = arith.constant 0 : index
    %c0_21 = arith.constant 0 : index
    %56 = vector.load %arg4[%c0_20, %c0_21] : memref<128x512xf32, #tpu.memory_space<vmem>>, vector<128x512xf32>
    %cst_22 = arith.constant dense<0.000000e+00> : vector<8x512xf32>
    %57 = tpu.matmul %54, %56, %cst_22 {dimension_numbers = #tpu.dot_dimension_numbers<[1], [0], [0], [1], [0, 0, 1, 1], [], []>} : vector<8x128xf32>, vector<128x512xf32>, vector<8x512xf32> -> vector<8x512xf32>
    %58 = arith.addf %55, %57 : vector<8x512xf32>
    %59 = vector.extract_strided_slice %58 {offsets = [0, 0], sizes = [8, 384], strides = [1, 1]} : vector<8x512xf32> to vector<8x384xf32>
    %60 = arith.negf %59 : vector<8x384xf32>
    %61 = math.exp %60 : vector<8x384xf32>
    %cst_23 = arith.constant 1.000000e+00 : f32
    %62 = vector.broadcast %cst_23 : f32 to vector<8x384xf32>
    %63 = arith.addf %62, %61 : vector<8x384xf32>
    %64 = arith.divf %62, %63 : vector<8x384xf32>
    %65 = vector.extract_strided_slice %64 {offsets = [0, 0], sizes = [8, 128], strides = [1, 1]} : vector<8x384xf32> to vector<8x128xf32>
    %66 = vector.extract_strided_slice %64 {offsets = [0, 128], sizes = [8, 128], strides = [1, 1]} : vector<8x384xf32> to vector<8x128xf32>
    %67 = vector.extract_strided_slice %64 {offsets = [0, 256], sizes = [8, 128], strides = [1, 1]} : vector<8x384xf32> to vector<8x128xf32>
    %68 = vector.extract_strided_slice %58 {offsets = [0, 384], sizes = [8, 128], strides = [1, 1]} : vector<8x512xf32> to vector<8x128xf32>
    %69 = math.tanh %68 : vector<8x128xf32>
    %70 = arith.mulf %66, %52 : vector<8x128xf32>
    %71 = arith.mulf %65, %69 : vector<8x128xf32>
    %72 = arith.addf %70, %71 : vector<8x128xf32>
    %73 = math.tanh %72 : vector<8x128xf32>
    %74 = arith.mulf %67, %73 : vector<8x128xf32>
    %c16 = arith.constant 16 : index
    %c0_24 = arith.constant 0 : index
    %75 = vector.load %arg11[%c16, %c0_24] : memref<40x512xf32, #tpu.memory_space<vmem>>, vector<8x512xf32>
    %c0_25 = arith.constant 0 : index
    %c0_26 = arith.constant 0 : index
    %76 = vector.load %arg4[%c0_25, %c0_26] : memref<128x512xf32, #tpu.memory_space<vmem>>, vector<128x512xf32>
    %cst_27 = arith.constant dense<0.000000e+00> : vector<8x512xf32>
    %77 = tpu.matmul %74, %76, %cst_27 {dimension_numbers = #tpu.dot_dimension_numbers<[1], [0], [0], [1], [0, 0, 1, 1], [], []>} : vector<8x128xf32>, vector<128x512xf32>, vector<8x512xf32> -> vector<8x512xf32>
    %78 = arith.addf %75, %77 : vector<8x512xf32>
    %79 = vector.extract_strided_slice %78 {offsets = [0, 0], sizes = [8, 384], strides = [1, 1]} : vector<8x512xf32> to vector<8x384xf32>
    %80 = arith.negf %79 : vector<8x384xf32>
    %81 = math.exp %80 : vector<8x384xf32>
    %cst_28 = arith.constant 1.000000e+00 : f32
    %82 = vector.broadcast %cst_28 : f32 to vector<8x384xf32>
    %83 = arith.addf %82, %81 : vector<8x384xf32>
    %84 = arith.divf %82, %83 : vector<8x384xf32>
    %85 = vector.extract_strided_slice %84 {offsets = [0, 0], sizes = [8, 128], strides = [1, 1]} : vector<8x384xf32> to vector<8x128xf32>
    %86 = vector.extract_strided_slice %84 {offsets = [0, 128], sizes = [8, 128], strides = [1, 1]} : vector<8x384xf32> to vector<8x128xf32>
    %87 = vector.extract_strided_slice %84 {offsets = [0, 256], sizes = [8, 128], strides = [1, 1]} : vector<8x384xf32> to vector<8x128xf32>
    %88 = vector.extract_strided_slice %78 {offsets = [0, 384], sizes = [8, 128], strides = [1, 1]} : vector<8x512xf32> to vector<8x128xf32>
    %89 = math.tanh %88 : vector<8x128xf32>
    %90 = arith.mulf %86, %72 : vector<8x128xf32>
    %91 = arith.mulf %85, %89 : vector<8x128xf32>
    %92 = arith.addf %90, %91 : vector<8x128xf32>
    %93 = math.tanh %92 : vector<8x128xf32>
    %94 = arith.mulf %87, %93 : vector<8x128xf32>
    %c24 = arith.constant 24 : index
    %c0_29 = arith.constant 0 : index
    %95 = vector.load %arg11[%c24, %c0_29] : memref<40x512xf32, #tpu.memory_space<vmem>>, vector<8x512xf32>
    %c0_30 = arith.constant 0 : index
    %c0_31 = arith.constant 0 : index
    %96 = vector.load %arg4[%c0_30, %c0_31] : memref<128x512xf32, #tpu.memory_space<vmem>>, vector<128x512xf32>
    %cst_32 = arith.constant dense<0.000000e+00> : vector<8x512xf32>
    %97 = tpu.matmul %94, %96, %cst_32 {dimension_numbers = #tpu.dot_dimension_numbers<[1], [0], [0], [1], [0, 0, 1, 1], [], []>} : vector<8x128xf32>, vector<128x512xf32>, vector<8x512xf32> -> vector<8x512xf32>
    %98 = arith.addf %95, %97 : vector<8x512xf32>
    %99 = vector.extract_strided_slice %98 {offsets = [0, 0], sizes = [8, 384], strides = [1, 1]} : vector<8x512xf32> to vector<8x384xf32>
    %100 = arith.negf %99 : vector<8x384xf32>
    %101 = math.exp %100 : vector<8x384xf32>
    %cst_33 = arith.constant 1.000000e+00 : f32
    %102 = vector.broadcast %cst_33 : f32 to vector<8x384xf32>
    %103 = arith.addf %102, %101 : vector<8x384xf32>
    %104 = arith.divf %102, %103 : vector<8x384xf32>
    %105 = vector.extract_strided_slice %104 {offsets = [0, 0], sizes = [8, 128], strides = [1, 1]} : vector<8x384xf32> to vector<8x128xf32>
    %106 = vector.extract_strided_slice %104 {offsets = [0, 128], sizes = [8, 128], strides = [1, 1]} : vector<8x384xf32> to vector<8x128xf32>
    %107 = vector.extract_strided_slice %104 {offsets = [0, 256], sizes = [8, 128], strides = [1, 1]} : vector<8x384xf32> to vector<8x128xf32>
    %108 = vector.extract_strided_slice %98 {offsets = [0, 384], sizes = [8, 128], strides = [1, 1]} : vector<8x512xf32> to vector<8x128xf32>
    %109 = math.tanh %108 : vector<8x128xf32>
    %110 = arith.mulf %106, %92 : vector<8x128xf32>
    %111 = arith.mulf %105, %109 : vector<8x128xf32>
    %112 = arith.addf %110, %111 : vector<8x128xf32>
    %113 = math.tanh %112 : vector<8x128xf32>
    %114 = arith.mulf %107, %113 : vector<8x128xf32>
    %c5_i32 = arith.constant 5 : i32
    %115 = arith.muli %arg1, %c5_i32 : i32
    %c3_i32 = arith.constant 3 : i32
    %116 = arith.addi %115, %c3_i32 : i32
    %c8_i32 = arith.constant 8 : i32
    %117 = arith.cmpi slt, %116, %c8_i32 : i32
    %118 = arith.extui %117 : i1 to i32
    %119 = arith.sitofp %118 : i32 to f32
    %120 = vector.broadcast %119 : f32 to vector<8x128xf32>
    %121 = arith.mulf %112, %120 : vector<8x128xf32>
    %cst_34 = arith.constant 1.000000e+00 : f32
    %122 = arith.subf %cst_34, %119 : f32
    %123 = vector.broadcast %122 : f32 to vector<8x128xf32>
    %124 = arith.mulf %92, %123 : vector<8x128xf32>
    %125 = arith.addf %121, %124 : vector<8x128xf32>
    %126 = vector.broadcast %119 : f32 to vector<8x128xf32>
    %127 = arith.mulf %114, %126 : vector<8x128xf32>
    %cst_35 = arith.constant 1.000000e+00 : f32
    %128 = arith.subf %cst_35, %119 : f32
    %129 = vector.broadcast %128 : f32 to vector<8x128xf32>
    %130 = arith.mulf %94, %129 : vector<8x128xf32>
    %131 = arith.addf %127, %130 : vector<8x128xf32>
    %c32 = arith.constant 32 : index
    %c0_36 = arith.constant 0 : index
    %132 = vector.load %arg11[%c32, %c0_36] : memref<40x512xf32, #tpu.memory_space<vmem>>, vector<8x512xf32>
    %c0_37 = arith.constant 0 : index
    %c0_38 = arith.constant 0 : index
    %133 = vector.load %arg4[%c0_37, %c0_38] : memref<128x512xf32, #tpu.memory_space<vmem>>, vector<128x512xf32>
    %cst_39 = arith.constant dense<0.000000e+00> : vector<8x512xf32>
    %134 = tpu.matmul %131, %133, %cst_39 {dimension_numbers = #tpu.dot_dimension_numbers<[1], [0], [0], [1], [0, 0, 1, 1], [], []>} : vector<8x128xf32>, vector<128x512xf32>, vector<8x512xf32> -> vector<8x512xf32>
    %135 = arith.addf %132, %134 : vector<8x512xf32>
    %136 = vector.extract_strided_slice %135 {offsets = [0, 0], sizes = [8, 384], strides = [1, 1]} : vector<8x512xf32> to vector<8x384xf32>
    %137 = arith.negf %136 : vector<8x384xf32>
    %138 = math.exp %137 : vector<8x384xf32>
    %cst_40 = arith.constant 1.000000e+00 : f32
    %139 = vector.broadcast %cst_40 : f32 to vector<8x384xf32>
    %140 = arith.addf %139, %138 : vector<8x384xf32>
    %141 = arith.divf %139, %140 : vector<8x384xf32>
    %142 = vector.extract_strided_slice %141 {offsets = [0, 0], sizes = [8, 128], strides = [1, 1]} : vector<8x384xf32> to vector<8x128xf32>
    %143 = vector.extract_strided_slice %141 {offsets = [0, 128], sizes = [8, 128], strides = [1, 1]} : vector<8x384xf32> to vector<8x128xf32>
    %144 = vector.extract_strided_slice %141 {offsets = [0, 256], sizes = [8, 128], strides = [1, 1]} : vector<8x384xf32> to vector<8x128xf32>
    %145 = vector.extract_strided_slice %135 {offsets = [0, 384], sizes = [8, 128], strides = [1, 1]} : vector<8x512xf32> to vector<8x128xf32>
    %146 = math.tanh %145 : vector<8x128xf32>
    %147 = arith.mulf %143, %125 : vector<8x128xf32>
    %148 = arith.mulf %142, %146 : vector<8x128xf32>
    %149 = arith.addf %147, %148 : vector<8x128xf32>
    %150 = math.tanh %149 : vector<8x128xf32>
    %151 = arith.mulf %144, %150 : vector<8x128xf32>
    %c5_i32_41 = arith.constant 5 : i32
    %152 = arith.muli %arg1, %c5_i32_41 : i32
    %c4_i32 = arith.constant 4 : i32
    %153 = arith.addi %152, %c4_i32 : i32
    %c8_i32_42 = arith.constant 8 : i32
    %154 = arith.cmpi slt, %153, %c8_i32_42 : i32
    %155 = arith.extui %154 : i1 to i32
    %156 = arith.sitofp %155 : i32 to f32
    %157 = vector.broadcast %156 : f32 to vector<8x128xf32>
    %158 = arith.mulf %149, %157 : vector<8x128xf32>
    %cst_43 = arith.constant 1.000000e+00 : f32
    %159 = arith.subf %cst_43, %156 : f32
    %160 = vector.broadcast %159 : f32 to vector<8x128xf32>
    %161 = arith.mulf %125, %160 : vector<8x128xf32>
    %162 = arith.addf %158, %161 : vector<8x128xf32>
    %163 = vector.broadcast %156 : f32 to vector<8x128xf32>
    %164 = arith.mulf %151, %163 : vector<8x128xf32>
    %cst_44 = arith.constant 1.000000e+00 : f32
    %165 = arith.subf %cst_44, %156 : f32
    %166 = vector.broadcast %165 : f32 to vector<8x128xf32>
    %167 = arith.mulf %131, %166 : vector<8x128xf32>
    %168 = arith.addf %164, %167 : vector<8x128xf32>
    %c0_45 = arith.constant 0 : index
    %c0_46 = arith.constant 0 : index
    %169 = vector.load %arg9[%c0_45, %c0_46] : memref<8x128xf32, #tpu.memory_space<vmem>>, vector<8x128xf32>
    tpu.vector_store %arg9[%c0_45, %c0_46], %168 {strides = array<i32>} : memref<8x128xf32, #tpu.memory_space<vmem>>, vector<8x128xf32>,
    %c0_47 = arith.constant 0 : index
    %c0_48 = arith.constant 0 : index
    %170 = vector.load %arg10[%c0_47, %c0_48] : memref<8x128xf32, #tpu.memory_space<vmem>>, vector<8x128xf32>
    tpu.vector_store %arg10[%c0_47, %c0_48], %162 {strides = array<i32>} : memref<8x128xf32, #tpu.memory_space<vmem>>, vector<8x128xf32>,
    %c1_i32 = arith.constant 1 : i32
    %171 = arith.cmpi eq, %arg1, %c1_i32 : i32
    %172 = arith.extui %171 : i1 to i32
    %c0_i32_49 = arith.constant 0 : i32
    %173 = arith.cmpi ne, %172, %c0_i32_49 : i32
    scf.if %173 {
      %c0_50 = arith.constant 0 : index
      %c0_51 = arith.constant 0 : index
      %174 = vector.load %arg6[%c0_50, %c0_51] : memref<1x128xf32, #tpu.memory_space<vmem>>, vector<1x128xf32>
      %175 = vector.broadcast %174 : vector<1x128xf32> to vector<8x128xf32>
      %176 = arith.mulf %168, %175 : vector<8x128xf32>
      %cst_52 = arith.constant dense<0.000000e+00> : vector<8xf32>
      %177 = vector.multi_reduction <add>, %176, %cst_52 [1] : vector<8x128xf32> to vector<8xf32>
      %178 = vector.shape_cast %177 : vector<8xf32> to vector<8x1xf32>
      %c0_53 = arith.constant 0 : index
      %c0_54 = arith.constant 0 : index
      %179 = vector.load %arg7[%c0_53, %c0_54] : memref<1x1xf32, #tpu.memory_space<vmem>>, vector<1x1xf32>
      %180 = vector.broadcast %179 : vector<1x1xf32> to vector<8x1xf32>
      %181 = arith.addf %178, %180 : vector<8x1xf32>
      %c0_55 = arith.constant 0 : index
      %c0_56 = arith.constant 0 : index
      %182 = vector.load %arg8[%c0_55, %c0_56] : memref<8x1xf32, #tpu.memory_space<vmem>>, vector<8x1xf32>
      tpu.vector_store %arg8[%c0_55, %c0_56], %181 {strides = array<i32>} : memref<8x1xf32, #tpu.memory_space<vmem>>, vector<8x1xf32>,
    } else {
    }
    return
  }
  func.func @transform_0(%arg0: i32, %arg1: i32) -> (i32, i32, i32, i32) {
    %c0_i32 = arith.constant 0 : i32
    %c0_i32_0 = arith.constant 0 : i32
    %c0_i32_1 = arith.constant 0 : i32
    return %arg1, %arg0, %c0_i32, %c0_i32_0 : i32, i32, i32, i32
  }
  func.func @transform_1(%arg0: i32, %arg1: i32) -> (i32, i32) {
    %c0_i32 = arith.constant 0 : i32
    %c0_i32_0 = arith.constant 0 : i32
    %c0_i32_1 = arith.constant 0 : i32
    return %c0_i32, %c0_i32_0 : i32, i32
  }
  func.func @transform_2(%arg0: i32, %arg1: i32) -> (i32, i32) {
    %c0_i32 = arith.constant 0 : i32
    %c0_i32_0 = arith.constant 0 : i32
    %c0_i32_1 = arith.constant 0 : i32
    return %c0_i32, %c0_i32_0 : i32, i32
  }
  func.func @transform_3(%arg0: i32, %arg1: i32) -> (i32, i32) {
    %c0_i32 = arith.constant 0 : i32
    %c0_i32_0 = arith.constant 0 : i32
    %c0_i32_1 = arith.constant 0 : i32
    return %c0_i32, %c0_i32_0 : i32, i32
  }
  func.func @transform_4(%arg0: i32, %arg1: i32) -> (i32, i32) {
    %c0_i32 = arith.constant 0 : i32
    %c0_i32_0 = arith.constant 0 : i32
    %c0_i32_1 = arith.constant 0 : i32
    return %c0_i32, %c0_i32_0 : i32, i32
  }
  func.func @transform_5(%arg0: i32, %arg1: i32) -> (i32, i32) {
    %c0_i32 = arith.constant 0 : i32
    %c0_i32_0 = arith.constant 0 : i32
    %c0_i32_1 = arith.constant 0 : i32
    return %c0_i32, %c0_i32_0 : i32, i32
  }
  func.func @transform_6(%arg0: i32, %arg1: i32) -> (i32, i32) {
    %c0_i32 = arith.constant 0 : i32
    %c0_i32_0 = arith.constant 0 : i32
    return %arg0, %c0_i32 : i32, i32
  }
}

</mosaic_0001>

<llo_original>
// kernel: tpu_custom_call.1
$region0: #{tpu_custom_call.1}
  #allocation0 [shape = 'u32[]', space=smem, size = 0x4, offset = 0x4, fixed_abs, tag = 'smem constant byte address 0x4 - core index']
  #allocation1 [shape = 'u32[72,128]{1,0:T(1,128)}', space=vmem, size = 0x9000, scoped, tag = 'internal scratch']
  #allocation2 [shape = 'f32[8,128]{1,0:T(8,128)}', space=vmem, size = 0x1000, scoped, tag = 'scratch operand']
  #allocation3 [shape = 'f32[8,128]{1,0:T(8,128)}', space=vmem, size = 0x1000, scoped, tag = 'scratch operand']
  #allocation4 [shape = 'f32[40,512]{1,0:T(8,128)}', space=vmem, size = 0x14000, scoped, tag = 'scratch operand']
  #allocation5 [shape = 'f32[1,1]{1,0:T(1,128)S(1)}', space=vmem, size = 0x200, scoped, tag = 'scoped memory for tpu_custom_call.1']
  %s0 = inlined_call_operand.vmem [shape: f32[2,1,40,4], index: 0, kind: input, shape index: {}]
  %s1 = inlined_call_operand.vmem [shape: f32[4,512], index: 1, kind: input, shape index: {}]
  %s2 = inlined_call_operand.hbm [shape: f32[128,512], index: 2, kind: input, shape index: {}]
  %s3 = inlined_call_operand.vmem [shape: f32[1,512], index: 3, kind: input, shape index: {}]
  %s4 = inlined_call_operand.vmem [shape: f32[1,128], index: 4, kind: input, shape index: {}]
  %s5 = inlined_call_operand.<no memory space> [shape: f32[1,1], index: 5, kind: input, shape index: {}]
  %s6 = inlined_call_operand.vmem [shape: f32[8,1], index: 6, kind: output, shape index: {}]
  %s7 = sld [smem:[#allocation0]]
  $region69: #{tpu_custom_call.1} parent=0
    _
  %s9 = ssub.s32 1, %s7
  %s10 = scalar_select 0, %s9, %s7
  %v11 = vstv %s5
  %12 = vst [vmem:[#allocation5] sm:$0x1] %v11
  $region1: #{tpu_custom_call.1} parent=0
    #allocation6 [shape = 'u8[262144]{0}', space=vmem, size = 0x40000, scoped, tag = 'input window, operand 2, single buffered']
    #allocation7 [shape = 's32[2]{0}', space=sflag, size = 0x8, scoped, tag = 'scoped memory for tpu_custom_call.1']
    %13 = vsyncpa [#allocation7], 0
    loop: start=0, step=1, limit=4
    $region2: #{tpu_custom_call.1} parent=1 // loop_pre_header
      _
    $region3: #{tpu_custom_call.1} parent=1 // loop_header
      %s15 = sphi 0, %s19
      %p16 = scmp.ge.s32.totalorder %s15, 4
      %s22 = sphi 0, %s34
      %s23 = sphi 0, %s30
      %s24 = sphi 0, %s22
      %s25 = sphi 0, %s23
      %s26 = sphi 0, %s24
      %s27 = sphi 0, %s25
      %s39 = sphi 0, %s41
      %s42 = sphi 0, %s39
      %s43 = sphi 0, %s42
      %s59 = sphi 0, %s43
      %s63 = sphi 0, %s63
      %s65 = sphi 0, %s63
      %s66 = sphi 0, %s65
      %s80 = sphi 0, %s66
      %s84 = sphi 0, %s84
      %s86 = sphi 0, %s84
      %s87 = sphi 0, %s86
      %s101 = sphi 0, %s87
      %s105 = sphi 0, %s105
      %s107 = sphi 0, %s105
      %s108 = sphi 0, %s107
      %s122 = sphi 0, %s108
      %s126 = sphi 0, %s126
      %s128 = sphi 0, %s126
      %s129 = sphi 0, %s128
      %s143 = sphi 0, %s129
      %s147 = sphi 0, %s147
      %s149 = sphi 0, %s147
      %s150 = sphi 0, %s149
      %s164 = sphi 0, %s150
      %s170 = sphi 0, %s172
      %s173 = sphi 0, %s170
      %s174 = sphi 0, %s173
      %s190 = sphi 0, %s174
    $region4: #{tpu_custom_call.1} parent=1 // loop_header_branch
      %18 = sbr.rel (%p16) target = $region8
    $region5: #{tpu_custom_call.1} parent=1 // loop_body
      %s20 = ssub.s32 %s15, 1
      %s21 = ssub.s32 %s15, 2
      %s28 = sadd.s32 1, %s23
      %p29 = scmp.ge.s32.totalorder %s28, 2
      %s30 = scalar_select %p29, 0, %s28
      %s31 = sadd.s32 1, %s22
      %s32 = scalar_select %p29, %s31, %s22
      %p33 = scmp.ge.s32.totalorder %s32, 1
      %s34 = scalar_select %p33, 0, %s32
      %s35 = ssub.s32 %s23, %s30
      %s36 = ssub.s32 %s22, %s34
      %s37 = sor.u32 %s35, %s36
      %p38 = scmp.eq.s32.totalorder %s37, 0
      %s40 = sadd.s32 %s39, 1
      %s41 = scalar_select %p38, %s39, %s40
      %p44 = pneg %p38
      %p45 = scmp.eq.s32.totalorder %s15, 1
      %p46 = por %p44, %p45
      %p47 = scmp.ne.s32.totalorder %s39, %s42
      %p48 = scmp.eq.s32.totalorder %s15, 0
      %p49 = por %p47, %p48
      %p50 = scmp.ne.s32.totalorder %s39, %s42
      %p51 = scmp.eq.s32.totalorder %s20, 1
      %p52 = por %p50, %p51
      %p53 = scmp.ne.s32.totalorder %s42, %s43
      %p54 = scmp.eq.s32.totalorder %s20, 0
      %p55 = por %p53, %p54
      %p56 = scmp.ne.s32.totalorder %s42, %s43
      %p57 = scmp.eq.s32.totalorder %s21, 1
      %p58 = por %p56, %p57
      %p60 = scmp.ne.s32.totalorder %s43, %s59
      %p61 = scmp.eq.s32.totalorder %s21, 0
      %p62 = por %p60, %p61
      %s64 = sadd.s32 %s63, 1
      %p67 = scmp.eq.s32.totalorder %s15, 1
      %p68 = scmp.ne.s32.totalorder %s63, %s65
      %p69 = scmp.eq.s32.totalorder %s15, 0
      %p70 = por %p68, %p69
      %p71 = scmp.ne.s32.totalorder %s63, %s65
      %p72 = scmp.eq.s32.totalorder %s20, 1
      %p73 = por %p71, %p72
      %p74 = scmp.ne.s32.totalorder %s65, %s66
      %p75 = scmp.eq.s32.totalorder %s20, 0
      %p76 = por %p74, %p75
      %p77 = scmp.ne.s32.totalorder %s65, %s66
      %p78 = scmp.eq.s32.totalorder %s21, 1
      %p79 = por %p77, %p78
      %p81 = scmp.ne.s32.totalorder %s66, %s80
      %p82 = scmp.eq.s32.totalorder %s21, 0
      %p83 = por %p81, %p82
      %s85 = sadd.s32 %s84, 1
      %p88 = scmp.eq.s32.totalorder %s15, 1
      %p89 = scmp.ne.s32.totalorder %s84, %s86
      %p90 = scmp.eq.s32.totalorder %s15, 0
      %p91 = por %p89, %p90
      %p92 = scmp.ne.s32.totalorder %s84, %s86
      %p93 = scmp.eq.s32.totalorder %s20, 1
      %p94 = por %p92, %p93
      %p95 = scmp.ne.s32.totalorder %s86, %s87
      %p96 = scmp.eq.s32.totalorder %s20, 0
      %p97 = por %p95, %p96
      %p98 = scmp.ne.s32.totalorder %s86, %s87
      %p99 = scmp.eq.s32.totalorder %s21, 1
      %p100 = por %p98, %p99
      %p102 = scmp.ne.s32.totalorder %s87, %s101
      %p103 = scmp.eq.s32.totalorder %s21, 0
      %p104 = por %p102, %p103
      %s106 = sadd.s32 %s105, 1
      %p109 = scmp.eq.s32.totalorder %s15, 1
      %p110 = scmp.ne.s32.totalorder %s105, %s107
      %p111 = scmp.eq.s32.totalorder %s15, 0
      %p112 = por %p110, %p111
      %p113 = scmp.ne.s32.totalorder %s105, %s107
      %p114 = scmp.eq.s32.totalorder %s20, 1
      %p115 = por %p113, %p114
      %p116 = scmp.ne.s32.totalorder %s107, %s108
      %p117 = scmp.eq.s32.totalorder %s20, 0
      %p118 = por %p116, %p117
      %p119 = scmp.ne.s32.totalorder %s107, %s108
      %p120 = scmp.eq.s32.totalorder %s21, 1
      %p121 = por %p119, %p120
      %p123 = scmp.ne.s32.totalorder %s108, %s122
      %p124 = scmp.eq.s32.totalorder %s21, 0
      %p125 = por %p123, %p124
      %s127 = sadd.s32 %s126, 1
      %p130 = scmp.eq.s32.totalorder %s15, 1
      %p131 = scmp.ne.s32.totalorder %s126, %s128
      %p132 = scmp.eq.s32.totalorder %s15, 0
      %p133 = por %p131, %p132
      %p134 = scmp.ne.s32.totalorder %s126, %s128
      %p135 = scmp.eq.s32.totalorder %s20, 1
      %p136 = por %p134, %p135
      %p137 = scmp.ne.s32.totalorder %s128, %s129
      %p138 = scmp.eq.s32.totalorder %s20, 0
      %p139 = por %p137, %p138
      %p140 = scmp.ne.s32.totalorder %s128, %s129
      %p141 = scmp.eq.s32.totalorder %s21, 1
      %p142 = por %p140, %p141
      %p144 = scmp.ne.s32.totalorder %s129, %s143
      %p145 = scmp.eq.s32.totalorder %s21, 0
      %p146 = por %p144, %p145
      %s148 = sadd.s32 %s147, 1
      %p151 = scmp.eq.s32.totalorder %s15, 1
      %p152 = scmp.ne.s32.totalorder %s147, %s149
      %p153 = scmp.eq.s32.totalorder %s15, 0
      %p154 = por %p152, %p153
      %p155 = scmp.ne.s32.totalorder %s147, %s149
      %p156 = scmp.eq.s32.totalorder %s20, 1
      %p157 = por %p155, %p156
      %p158 = scmp.ne.s32.totalorder %s149, %s150
      %p159 = scmp.eq.s32.totalorder %s20, 0
      %p160 = por %p158, %p159
      %p161 = scmp.ne.s32.totalorder %s149, %s150
      %p162 = scmp.eq.s32.totalorder %s21, 1
      %p163 = por %p161, %p162
      %p165 = scmp.ne.s32.totalorder %s150, %s164
      %p166 = scmp.eq.s32.totalorder %s21, 0
      %p167 = por %p165, %p166
      %s168 = ssub.s32 %s22, %s34
      %p169 = scmp.eq.s32.totalorder %s168, 0
      %s171 = sadd.s32 %s170, 1
      %s172 = scalar_select %p169, %s170, %s171
      %p175 = pneg %p169
      %p176 = scmp.eq.s32.totalorder %s15, 1
      %p177 = por %p175, %p176
      %p178 = scmp.ne.s32.totalorder %s170, %s173
      %p179 = scmp.eq.s32.totalorder %s15, 0
      %p180 = por %p178, %p179
      %p181 = scmp.ne.s32.totalorder %s170, %s173
      %p182 = scmp.eq.s32.totalorder %s20, 1
      %p183 = por %p181, %p182
      %p184 = scmp.ne.s32.totalorder %s173, %s174
      %p185 = scmp.eq.s32.totalorder %s20, 0
      %p186 = por %p184, %p185
      %p187 = scmp.ne.s32.totalorder %s173, %s174
      %p188 = scmp.eq.s32.totalorder %s21, 1
      %p189 = por %p187, %p188
      %p191 = scmp.ne.s32.totalorder %s174, %s190
      %p192 = scmp.eq.s32.totalorder %s21, 0
      %p193 = por %p191, %p192
      %p194 = scmp.le.s32.totalorder 1, %s15
      %p195 = scmp.lt.s32.totalorder %s15, 3
      %p196 = pnand %p194, %p195
      %p197 = pneg %p196
      // Predicated region
      $region9: #{tpu_custom_call.1} parent=5 // pred_check
        _
      $region10: #{tpu_custom_call.1} parent=5 // pred_check_branch
        %199 = sbr.rel (%p196) target = $region12
      $region11: #{tpu_custom_call.1} parent=5 // pred_region
        %s200 = ssub.s32 %s15, 1
        // Predicated region
        $region13: #{tpu_custom_call.1} parent=11 // pred_check
          %p201 = pneg %p76
        $region14: #{tpu_custom_call.1} parent=11 // pred_check_branch
          %203 = sbr.rel (%p201) target = $region16
        $region15: #{tpu_custom_call.1} parent=11 // pred_region
          _
        $region16: #{tpu_custom_call.1} parent=11 // pred_fallthru
          _
        // Predicated region
        $region17: #{tpu_custom_call.1} parent=11 // pred_check
          %p204 = pneg %p97
        $region18: #{tpu_custom_call.1} parent=11 // pred_check_branch
          %206 = sbr.rel (%p204) target = $region20
        $region19: #{tpu_custom_call.1} parent=11 // pred_region
          %208 = vsyncadd [#allocation7], 0
          %s209 = sshll.u32 %s2, 4
          %s210 = int_to_ptr.hbm [resolvable:$true] %s209
          %s211 = sshll.u32 [#allocation6], 4
          %s212 = int_to_ptr.vmem [resolvable:$true] %s211
          %217 = dma.hbm_to_vmem [thread:$0]  %s210, 8192, %s212, [#allocation7], 512, 512, 32
        $region20: #{tpu_custom_call.1} parent=11 // pred_fallthru
          _
        // Predicated region
        $region21: #{tpu_custom_call.1} parent=11 // pred_check
          %p218 = pneg %p118
        $region22: #{tpu_custom_call.1} parent=11 // pred_check_branch
          %220 = sbr.rel (%p218) target = $region24
        $region23: #{tpu_custom_call.1} parent=11 // pred_region
          _
        $region24: #{tpu_custom_call.1} parent=11 // pred_fallthru
          _
        // Predicated region
        $region25: #{tpu_custom_call.1} parent=11 // pred_check
          %p221 = pneg %p139
        $region26: #{tpu_custom_call.1} parent=11 // pred_check_branch
          %223 = sbr.rel (%p221) target = $region28
        $region27: #{tpu_custom_call.1} parent=11 // pred_region
          _
        $region28: #{tpu_custom_call.1} parent=11 // pred_fallthru
          _
        // Predicated region
        $region29: #{tpu_custom_call.1} parent=11 // pred_check
          %p224 = pneg %p160
        $region30: #{tpu_custom_call.1} parent=11 // pred_check_branch
          %226 = sbr.rel (%p224) target = $region32
        $region31: #{tpu_custom_call.1} parent=11 // pred_region
          _
        $region32: #{tpu_custom_call.1} parent=11 // pred_fallthru
          _
      $region12: #{tpu_custom_call.1} parent=5 // pred_fallthru
        _
      %p227 = scmp.lt.s32.totalorder %s15, 2
      // Predicated region
      $region33: #{tpu_custom_call.1} parent=5 // pred_check
        %p228 = pneg %p227
      $region34: #{tpu_custom_call.1} parent=5 // pred_check_branch
        %230 = sbr.rel (%p228) target = $region36
      $region35: #{tpu_custom_call.1} parent=5 // pred_region
        // Predicated region
        $region37: #{tpu_custom_call.1} parent=35 // pred_check
          %p231 = pneg %p49
        $region38: #{tpu_custom_call.1} parent=35 // pred_check_branch
          %233 = sbr.rel (%p231) target = $region40
        $region39: #{tpu_custom_call.1} parent=35 // pred_region
          %p234 = scmp.lt.s32.totalorder %s23, 1
          %s235 = scalar_select %p234, %s23, 1
          %p236 = scmp.lt.s32.totalorder %s22, 0
          %s237 = scalar_select %p236, %s22, 0
          %s238 = smul.addr %s237, 5
          %s239 = smul.addr %s235, 5
          %s240 = sadd.s32 %s238, %s239
          %s241 = smul.addr %s240, 8
          %s242 = scalar_lea.vmem %s0, %s241
        $region40: #{tpu_custom_call.1} parent=35 // pred_fallthru
          _
      $region36: #{tpu_custom_call.1} parent=5 // pred_fallthru
        _
      %p243 = scmp.le.s32.totalorder 1, %s15
      %p244 = scmp.lt.s32.totalorder %s15, 3
      %p245 = pnand %p243, %p244
      %p246 = pneg %p245
      // Predicated region
      $region41: #{tpu_custom_call.1} parent=5 // pred_check
        _
      $region42: #{tpu_custom_call.1} parent=5 // pred_check_branch
        %248 = sbr.rel (%p245) target = $region44
      $region43: #{tpu_custom_call.1} parent=5 // pred_region
        %s249 = ssub.s32 %s15, 1
        // Predicated region
        $region45: #{tpu_custom_call.1} parent=43 // pred_check
          %p250 = pneg %p97
        $region46: #{tpu_custom_call.1} parent=43 // pred_check_branch
          %252 = sbr.rel (%p250) target = $region48
        $region47: #{tpu_custom_call.1} parent=43 // pred_region
          %254 = dma.done [#allocation7], 8192
        $region48: #{tpu_custom_call.1} parent=43 // pred_fallthru
          _
        %p255 = scmp.lt.s32.totalorder %s25, 1
        %s256 = scalar_select %p255, %s25, 1
        %p257 = scmp.lt.s32.totalorder %s24, 0
        %s258 = scalar_select %p257, %s24, 0
        %s259 = smul.addr %s258, 5
        %s260 = smul.addr %s256, 5
        %s261 = sadd.s32 %s259, %s260
        %s262 = smul.addr %s261, 8
        %s263 = scalar_lea.vmem %s0, %s262
        %p264 = pneg %p55
        %p265 = pneg %p52
        %p266 = pneg %p76
        %p267 = pneg %p73
        %p268 = pneg %p97
        %p269 = pneg %p94
        %p270 = pneg %p118
        %p271 = pneg %p115
        %p272 = pneg %p139
        %p273 = pneg %p136
        %p274 = pneg %p160
        %p275 = pneg %p157
        %p276 = pneg %p186
        %p277 = pneg %p183
        %p278 = scmp.lt.s32.totalorder %s24, 0
        %s279 = scalar_select %p278, %s24, 0
        %s280 = smul.addr %s279, 8
        %s281 = scalar_lea.vmem %s6, %s280
        %p282 = scmp.lt.s32.totalorder %s25, 1
        %s283 = scalar_select %p282, %s25, 1
        %p284 = scmp.lt.s32.totalorder %s24, 0
        %s285 = scalar_select %p284, %s24, 0
        %s286 = smul.addr %s285, 5
        %s287 = smul.addr %s283, 5
        %s288 = sadd.s32 %s286, %s287
        %s289 = smul.addr %s288, 8
        %s290 = scalar_lea.vmem %s0, %s289
        %p291 = scmp.lt.s32.totalorder %s24, 0
        %s292 = scalar_select %p291, %s24, 0
        %s293 = smul.addr %s292, 8
        %s294 = scalar_lea.vmem %s6, %s293
        %p295 = scmp.eq.s32.totalorder %s25, 0
        // Predicated region
        $region49: #{tpu_custom_call.1} parent=43 // pred_check
          %p296 = pneg %p295
        $region50: #{tpu_custom_call.1} parent=43 // pred_check_branch
          %298 = sbr.rel (%p296) target = $region52
        $region51: #{tpu_custom_call.1} parent=43 // pred_region
          %299 = vst [vmem:[#allocation2] sm:$0xff] 0.0
          %300 = vst [vmem:[#allocation3] sm:$0xff] 0.0
        $region52: #{tpu_custom_call.1} parent=43 // pred_fallthru
          _
        %v301 = vld [vmem:[%s290] sm:$0xff]
        %v302 = vld [vmem:[%s290 + $0x8] sm:$0xff]
        %v303 = vld [vmem:[%s290 + $0x10] sm:$0xff]
        %v304 = vld [vmem:[%s290 + $0x18] sm:$0xff]
        %v305 = vld [vmem:[%s290 + $0x20] sm:$0xff]
        %v306 = vld [vmem:[%s1] sm:$0xff]
        %v307 = vld [vmem:[%s1 + $0x8] sm:$0xff]
        %309 = vset.pattern.permute.xlu0 0
        %310 = vperm.xlu0 %309, %v301
        %v311 = vpop.permute.xlu0 %310
        %314 = vset.pattern.permute.xlu0 0
        %315 = vperm.xlu0 %314, %v302
        %v316 = vpop.permute.xlu0 %315
        %319 = vset.pattern.permute.xlu0 0
        %320 = vperm.xlu0 %319, %v303
        %v321 = vpop.permute.xlu0 %320
        %324 = vset.pattern.permute.xlu0 0
        %325 = vperm.xlu0 %324, %v304
        %v326 = vpop.permute.xlu0 %325
        %329 = vset.pattern.permute.xlu0 0
        %330 = vperm.xlu0 %329, %v305
        %v331 = vpop.permute.xlu0 %330
        %v335 = vperm.slane %v306, 0
        %v336 = vperm.slane %v306, 4
        %v337 = vperm.slane %v307, 0
        %v338 = vperm.slane %v307, 4
        %v343 = vperm.slane %v335, 0
        %v344 = vperm.slane %v336, 0
        %v345 = vperm.slane %v337, 0
        %v346 = vperm.slane %v338, 0
        %v347 = vmul.f32 %v311, %v343
        %v348 = vmul.f32 %v311, %v344
        %v349 = vmul.f32 %v311, %v345
        %v350 = vmul.f32 %v311, %v346
        %v351 = vmul.f32 %v316, %v343
        %v352 = vmul.f32 %v316, %v344
        %v353 = vmul.f32 %v316, %v345
        %v354 = vmul.f32 %v316, %v346
        %v355 = vmul.f32 %v321, %v343
        %v356 = vmul.f32 %v321, %v344
        %v357 = vmul.f32 %v321, %v345
        %v358 = vmul.f32 %v321, %v346
        %v359 = vmul.f32 %v326, %v343
        %v360 = vmul.f32 %v326, %v344
        %v361 = vmul.f32 %v326, %v345
        %v362 = vmul.f32 %v326, %v346
        %v363 = vmul.f32 %v331, %v343
        %v364 = vmul.f32 %v331, %v344
        %v365 = vmul.f32 %v331, %v345
        %v366 = vmul.f32 %v331, %v346
        %v367 = vld [vmem:[%s3] sm:$0xf]
        %v369 = vperm.slane %v367, 0
        %v370 = vperm.slane %v367, 1
        %v371 = vperm.slane %v367, 2
        %v372 = vperm.slane %v367, 3
        %v377 = vadd.f32 %v347, %v369
        %v378 = vadd.f32 %v348, %v370
        %v379 = vadd.f32 %v349, %v371
        %v380 = vadd.f32 %v350, %v372
        %v381 = vadd.f32 %v351, %v369
        %v382 = vadd.f32 %v352, %v370
        %v383 = vadd.f32 %v353, %v371
        %v384 = vadd.f32 %v354, %v372
        %v385 = vadd.f32 %v355, %v369
        %v386 = vadd.f32 %v356, %v370
        %v387 = vadd.f32 %v357, %v371
        %v388 = vadd.f32 %v358, %v372
        %v389 = vadd.f32 %v359, %v369
        %v390 = vadd.f32 %v360, %v370
        %v391 = vadd.f32 %v361, %v371
        %v392 = vadd.f32 %v362, %v372
        %v393 = vadd.f32 %v363, %v369
        %v394 = vadd.f32 %v364, %v370
        %v395 = vadd.f32 %v365, %v371
        %v396 = vadd.f32 %v366, %v372
        %397 = vset.pattern.permute.xlu0 1
        %398 = vperm.xlu0 %397, %v301
        %v399 = vpop.permute.xlu0 %398
        %401 = vset.pattern.permute.xlu0 1
        %402 = vperm.xlu0 %401, %v302
        %v403 = vpop.permute.xlu0 %402
        %405 = vset.pattern.permute.xlu0 1
        %406 = vperm.xlu0 %405, %v303
        %v407 = vpop.permute.xlu0 %406
        %409 = vset.pattern.permute.xlu0 1
        %410 = vperm.xlu0 %409, %v304
        %v411 = vpop.permute.xlu0 %410
        %413 = vset.pattern.permute.xlu0 1
        %414 = vperm.xlu0 %413, %v305
        %v415 = vpop.permute.xlu0 %414
        %v417 = vperm.slane %v306, 1
        %v418 = vperm.slane %v306, 5
        %v419 = vperm.slane %v307, 1
        %v420 = vperm.slane %v307, 5
        %v425 = vperm.slane %v417, 1
        %v426 = vperm.slane %v418, 1
        %v427 = vperm.slane %v419, 1
        %v428 = vperm.slane %v420, 1
        %v429 = vmul.f32 %v399, %v425
        %v430 = vmul.f32 %v399, %v426
        %v431 = vmul.f32 %v399, %v427
        %v432 = vmul.f32 %v399, %v428
        %v433 = vmul.f32 %v403, %v425
        %v434 = vmul.f32 %v403, %v426
        %v435 = vmul.f32 %v403, %v427
        %v436 = vmul.f32 %v403, %v428
        %v437 = vmul.f32 %v407, %v425
        %v438 = vmul.f32 %v407, %v426
        %v439 = vmul.f32 %v407, %v427
        %v440 = vmul.f32 %v407, %v428
        %v441 = vmul.f32 %v411, %v425
        %v442 = vmul.f32 %v411, %v426
        %v443 = vmul.f32 %v411, %v427
        %v444 = vmul.f32 %v411, %v428
        %v445 = vmul.f32 %v415, %v425
        %v446 = vmul.f32 %v415, %v426
        %v447 = vmul.f32 %v415, %v427
        %v448 = vmul.f32 %v415, %v428
        %v449 = vadd.f32 %v377, %v429
        %v450 = vadd.f32 %v378, %v430
        %v451 = vadd.f32 %v379, %v431
        %v452 = vadd.f32 %v380, %v432
        %v453 = vadd.f32 %v381, %v433
        %v454 = vadd.f32 %v382, %v434
        %v455 = vadd.f32 %v383, %v435
        %v456 = vadd.f32 %v384, %v436
        %v457 = vadd.f32 %v385, %v437
        %v458 = vadd.f32 %v386, %v438
        %v459 = vadd.f32 %v387, %v439
        %v460 = vadd.f32 %v388, %v440
        %v461 = vadd.f32 %v389, %v441
        %v462 = vadd.f32 %v390, %v442
        %v463 = vadd.f32 %v391, %v443
        %v464 = vadd.f32 %v392, %v444
        %v465 = vadd.f32 %v393, %v445
        %v466 = vadd.f32 %v394, %v446
        %v467 = vadd.f32 %v395, %v447
        %v468 = vadd.f32 %v396, %v448
        %469 = vset.pattern.permute.xlu0 2
        %470 = vperm.xlu0 %469, %v301
        %v471 = vpop.permute.xlu0 %470
        %473 = vset.pattern.permute.xlu0 2
        %474 = vperm.xlu0 %473, %v302
        %v475 = vpop.permute.xlu0 %474
        %477 = vset.pattern.permute.xlu0 2
        %478 = vperm.xlu0 %477, %v303
        %v479 = vpop.permute.xlu0 %478
        %481 = vset.pattern.permute.xlu0 2
        %482 = vperm.xlu0 %481, %v304
        %v483 = vpop.permute.xlu0 %482
        %485 = vset.pattern.permute.xlu0 2
        %486 = vperm.xlu0 %485, %v305
        %v487 = vpop.permute.xlu0 %486
        %v489 = vperm.slane %v306, 2
        %v490 = vperm.slane %v306, 6
        %v491 = vperm.slane %v307, 2
        %v492 = vperm.slane %v307, 6
        %v497 = vperm.slane %v489, 2
        %v498 = vperm.slane %v490, 2
        %v499 = vperm.slane %v491, 2
        %v500 = vperm.slane %v492, 2
        %v501 = vmul.f32 %v471, %v497
        %v502 = vmul.f32 %v471, %v498
        %v503 = vmul.f32 %v471, %v499
        %v504 = vmul.f32 %v471, %v500
        %v505 = vmul.f32 %v475, %v497
        %v506 = vmul.f32 %v475, %v498
        %v507 = vmul.f32 %v475, %v499
        %v508 = vmul.f32 %v475, %v500
        %v509 = vmul.f32 %v479, %v497
        %v510 = vmul.f32 %v479, %v498
        %v511 = vmul.f32 %v479, %v499
        %v512 = vmul.f32 %v479, %v500
        %v513 = vmul.f32 %v483, %v497
        %v514 = vmul.f32 %v483, %v498
        %v515 = vmul.f32 %v483, %v499
        %v516 = vmul.f32 %v483, %v500
        %v517 = vmul.f32 %v487, %v497
        %v518 = vmul.f32 %v487, %v498
        %v519 = vmul.f32 %v487, %v499
        %v520 = vmul.f32 %v487, %v500
        %v521 = vadd.f32 %v449, %v501
        %v522 = vadd.f32 %v450, %v502
        %v523 = vadd.f32 %v451, %v503
        %v524 = vadd.f32 %v452, %v504
        %v525 = vadd.f32 %v453, %v505
        %v526 = vadd.f32 %v454, %v506
        %v527 = vadd.f32 %v455, %v507
        %v528 = vadd.f32 %v456, %v508
        %v529 = vadd.f32 %v457, %v509
        %v530 = vadd.f32 %v458, %v510
        %v531 = vadd.f32 %v459, %v511
        %v532 = vadd.f32 %v460, %v512
        %v533 = vadd.f32 %v461, %v513
        %v534 = vadd.f32 %v462, %v514
        %v535 = vadd.f32 %v463, %v515
        %v536 = vadd.f32 %v464, %v516
        %v537 = vadd.f32 %v465, %v517
        %v538 = vadd.f32 %v466, %v518
        %v539 = vadd.f32 %v467, %v519
        %v540 = vadd.f32 %v468, %v520
        %541 = vset.pattern.permute.xlu0 3
        %542 = vperm.xlu0 %541, %v301
        %v543 = vpop.permute.xlu0 %542
        %545 = vset.pattern.permute.xlu0 3
        %546 = vperm.xlu0 %545, %v302
        %v547 = vpop.permute.xlu0 %546
        %549 = vset.pattern.permute.xlu0 3
        %550 = vperm.xlu0 %549, %v303
        %v551 = vpop.permute.xlu0 %550
        %553 = vset.pattern.permute.xlu0 3
        %554 = vperm.xlu0 %553, %v304
        %v555 = vpop.permute.xlu0 %554
        %557 = vset.pattern.permute.xlu0 3
        %558 = vperm.xlu0 %557, %v305
        %v559 = vpop.permute.xlu0 %558
        %v561 = vperm.slane %v306, 3
        %v562 = vperm.slane %v306, 7
        %v563 = vperm.slane %v307, 3
        %v564 = vperm.slane %v307, 7
        %v569 = vperm.slane %v561, 3
        %v570 = vperm.slane %v562, 3
        %v571 = vperm.slane %v563, 3
        %v572 = vperm.slane %v564, 3
        %v573 = vmul.f32 %v543, %v569
        %v574 = vmul.f32 %v543, %v570
        %v575 = vmul.f32 %v543, %v571
        %v576 = vmul.f32 %v543, %v572
        %v577 = vmul.f32 %v547, %v569
        %v578 = vmul.f32 %v547, %v570
        %v579 = vmul.f32 %v547, %v571
        %v580 = vmul.f32 %v547, %v572
        %v581 = vmul.f32 %v551, %v569
        %v582 = vmul.f32 %v551, %v570
        %v583 = vmul.f32 %v551, %v571
        %v584 = vmul.f32 %v551, %v572
        %v585 = vmul.f32 %v555, %v569
        %v586 = vmul.f32 %v555, %v570
        %v587 = vmul.f32 %v555, %v571
        %v588 = vmul.f32 %v555, %v572
        %v589 = vmul.f32 %v559, %v569
        %v590 = vmul.f32 %v559, %v570
        %v591 = vmul.f32 %v559, %v571
        %v592 = vmul.f32 %v559, %v572
        %v593 = vadd.f32 %v521, %v573
        %v594 = vadd.f32 %v522, %v574
        %v595 = vadd.f32 %v523, %v575
        %v596 = vadd.f32 %v524, %v576
        %v597 = vadd.f32 %v525, %v577
        %v598 = vadd.f32 %v526, %v578
        %v599 = vadd.f32 %v527, %v579
        %v600 = vadd.f32 %v528, %v580
        %v601 = vadd.f32 %v529, %v581
        %v602 = vadd.f32 %v530, %v582
        %v603 = vadd.f32 %v531, %v583
        %v604 = vadd.f32 %v532, %v584
        %v605 = vadd.f32 %v533, %v585
        %v606 = vadd.f32 %v534, %v586
        %v607 = vadd.f32 %v535, %v587
        %v608 = vadd.f32 %v536, %v588
        %v609 = vadd.f32 %v537, %v589
        %v610 = vadd.f32 %v538, %v590
        %v611 = vadd.f32 %v539, %v591
        %v612 = vadd.f32 %v540, %v592
        %613 = vst [vmem:[#allocation4] sm:$0xff] %v593
        %614 = vst [vmem:[#allocation4 + $0x8] sm:$0xff] %v594
        %615 = vst [vmem:[#allocation4 + $0x10] sm:$0xff] %v595
        %616 = vst [vmem:[#allocation4 + $0x18] sm:$0xff] %v596
        %617 = vst [vmem:[#allocation4 + $0x20] sm:$0xff] %v597
        %618 = vst [vmem:[#allocation4 + $0x28] sm:$0xff] %v598
        %619 = vst [vmem:[#allocation4 + $0x30] sm:$0xff] %v599
        %620 = vst [vmem:[#allocation4 + $0x38] sm:$0xff] %v600
        %621 = vst [vmem:[#allocation4 + $0x40] sm:$0xff] %v601
        %622 = vst [vmem:[#allocation4 + $0x48] sm:$0xff] %v602
        %623 = vst [vmem:[#allocation4 + $0x50] sm:$0xff] %v603
        %624 = vst [vmem:[#allocation4 + $0x58] sm:$0xff] %v604
        %625 = vst [vmem:[#allocation4 + $0x60] sm:$0xff] %v605
        %626 = vst [vmem:[#allocation4 + $0x68] sm:$0xff] %v606
        %627 = vst [vmem:[#allocation4 + $0x70] sm:$0xff] %v607
        %628 = vst [vmem:[#allocation4 + $0x78] sm:$0xff] %v608
        %629 = vst [vmem:[#allocation4 + $0x80] sm:$0xff] %v609
        %630 = vst [vmem:[#allocation4 + $0x88] sm:$0xff] %v610
        %631 = vst [vmem:[#allocation4 + $0x90] sm:$0xff] %v611
        %632 = vst [vmem:[#allocation4 + $0x98] sm:$0xff] %v612
        %v633 = vld [vmem:[#allocation2] sm:$0xff]
        %v634 = vld [vmem:[#allocation3] sm:$0xff]
        %v635 = vld [vmem:[#allocation4] sm:$0xff]
        %v636 = vld [vmem:[#allocation4 + $0x8] sm:$0xff]
        %v637 = vld [vmem:[#allocation4 + $0x10] sm:$0xff]
        %v638 = vld [vmem:[#allocation4 + $0x18] sm:$0xff]
        %v639 = vld [vmem:[#allocation6] sm:$0xff]
        %v640 = vld [vmem:[#allocation6 + $0x8] sm:$0xff]
        %v641 = vld [vmem:[#allocation6 + $0x10] sm:$0xff]
        %v642 = vld [vmem:[#allocation6 + $0x18] sm:$0xff]
        %v643 = vld [vmem:[#allocation6 + $0x20] sm:$0xff]
        %v644 = vld [vmem:[#allocation6 + $0x28] sm:$0xff]
        %v645 = vld [vmem:[#allocation6 + $0x30] sm:$0xff]
        %v646 = vld [vmem:[#allocation6 + $0x38] sm:$0xff]
        %v647 = vld [vmem:[#allocation6 + $0x40] sm:$0xff]
        %v648 = vld [vmem:[#allocation6 + $0x48] sm:$0xff]
        %v649 = vld [vmem:[#allocation6 + $0x50] sm:$0xff]
        %v650 = vld [vmem:[#allocation6 + $0x58] sm:$0xff]
        %v651 = vld [vmem:[#allocation6 + $0x60] sm:$0xff]
        %v652 = vld [vmem:[#allocation6 + $0x68] sm:$0xff]
        %v653 = vld [vmem:[#allocation6 + $0x70] sm:$0xff]
        %v654 = vld [vmem:[#allocation6 + $0x78] sm:$0xff]
        %v655 = vld [vmem:[#allocation6 + $0x80] sm:$0xff]
        %v656 = vld [vmem:[#allocation6 + $0x88] sm:$0xff]
        %v657 = vld [vmem:[#allocation6 + $0x90] sm:$0xff]
        %v658 = vld [vmem:[#allocation6 + $0x98] sm:$0xff]
        %v659 = vld [vmem:[#allocation6 + $0xa0] sm:$0xff]
        %v660 = vld [vmem:[#allocation6 + $0xa8] sm:$0xff]
        %v661 = vld [vmem:[#allocation6 + $0xb0] sm:$0xff]
        %v662 = vld [vmem:[#allocation6 + $0xb8] sm:$0xff]
        %v663 = vld [vmem:[#allocation6 + $0xc0] sm:$0xff]
        %v664 = vld [vmem:[#allocation6 + $0xc8] sm:$0xff]
        %v665 = vld [vmem:[#allocation6 + $0xd0] sm:$0xff]
        %v666 = vld [vmem:[#allocation6 + $0xd8] sm:$0xff]
        %v667 = vld [vmem:[#allocation6 + $0xe0] sm:$0xff]
        %v668 = vld [vmem:[#allocation6 + $0xe8] sm:$0xff]
        %v669 = vld [vmem:[#allocation6 + $0xf0] sm:$0xff]
        %v670 = vld [vmem:[#allocation6 + $0xf8] sm:$0xff]
        %v671 = vld [vmem:[#allocation6 + $0x100] sm:$0xff]
        %v672 = vld [vmem:[#allocation6 + $0x108] sm:$0xff]
        %v673 = vld [vmem:[#allocation6 + $0x110] sm:$0xff]
        %v674 = vld [vmem:[#allocation6 + $0x118] sm:$0xff]
        %v675 = vld [vmem:[#allocation6 + $0x120] sm:$0xff]
        %v676 = vld [vmem:[#allocation6 + $0x128] sm:$0xff]
        %v677 = vld [vmem:[#allocation6 + $0x130] sm:$0xff]
        %v678 = vld [vmem:[#allocation6 + $0x138] sm:$0xff]
        %v679 = vld [vmem:[#allocation6 + $0x140] sm:$0xff]
        %v680 = vld [vmem:[#allocation6 + $0x148] sm:$0xff]
        %v681 = vld [vmem:[#allocation6 + $0x150] sm:$0xff]
        %v682 = vld [vmem:[#allocation6 + $0x158] sm:$0xff]
        %v683 = vld [vmem:[#allocation6 + $0x160] sm:$0xff]
        %v684 = vld [vmem:[#allocation6 + $0x168] sm:$0xff]
        %v685 = vld [vmem:[#allocation6 + $0x170] sm:$0xff]
        %v686 = vld [vmem:[#allocation6 + $0x178] sm:$0xff]
        %v687 = vld [vmem:[#allocation6 + $0x180] sm:$0xff]
        %v688 = vld [vmem:[#allocation6 + $0x188] sm:$0xff]
        %v689 = vld [vmem:[#allocation6 + $0x190] sm:$0xff]
        %v690 = vld [vmem:[#allocation6 + $0x198] sm:$0xff]
        %v691 = vld [vmem:[#allocation6 + $0x1a0] sm:$0xff]
        %v692 = vld [vmem:[#allocation6 + $0x1a8] sm:$0xff]
        %v693 = vld [vmem:[#allocation6 + $0x1b0] sm:$0xff]
        %v694 = vld [vmem:[#allocation6 + $0x1b8] sm:$0xff]
        %v695 = vld [vmem:[#allocation6 + $0x1c0] sm:$0xff]
        %v696 = vld [vmem:[#allocation6 + $0x1c8] sm:$0xff]
        %v697 = vld [vmem:[#allocation6 + $0x1d0] sm:$0xff]
        %v698 = vld [vmem:[#allocation6 + $0x1d8] sm:$0xff]
        %v699 = vld [vmem:[#allocation6 + $0x1e0] sm:$0xff]
        %v700 = vld [vmem:[#allocation6 + $0x1e8] sm:$0xff]
        %v701 = vld [vmem:[#allocation6 + $0x1f0] sm:$0xff]
        %v702 = vld [vmem:[#allocation6 + $0x1f8] sm:$0xff]
        %703 = vmatpush.msra.mxu0 %v699
        %704 = vmatpush.msra.mxu0 %v695
        %705 = vmatpush.msra.mxu0 %v691
        %706 = vmatpush.msra.mxu0 %v687
        %707 = vmatpush.msra.mxu0 %v683
        %708 = vmatpush.msra.mxu0 %v679
        %709 = vmatpush.msra.mxu0 %v675
        %710 = vmatpush.msra.mxu0 %v671
        %711 = vmatpush.msra.mxu0 %v667
        %712 = vmatpush.msra.mxu0 %v663
        %713 = vmatpush.msra.mxu0 %v659
        %714 = vmatpush.msra.mxu0 %v655
        %715 = vmatpush.msra.mxu0 %v651
        %716 = vmatpush.msra.mxu0 %v647
        %717 = vmatpush.msra.mxu0 %v643
        %718 = vmatpush.msra.mxu0 %v639
        %719 = vmatmul.f32.gmra.mxu0 %v633
        %v720 = vpop.f32.mrf.mxu0
        %v721 = vadd.f32 0.0, %v720
        %722 = vdwg.mxu0
        %723 = vmatpush.msra.mxu0 %v700
        %724 = vmatpush.msra.mxu0 %v696
        %725 = vmatpush.msra.mxu0 %v692
        %726 = vmatpush.msra.mxu0 %v688
        %727 = vmatpush.msra.mxu0 %v684
        %728 = vmatpush.msra.mxu0 %v680
        %729 = vmatpush.msra.mxu0 %v676
        %730 = vmatpush.msra.mxu0 %v672
        %731 = vmatpush.msra.mxu0 %v668
        %732 = vmatpush.msra.mxu0 %v664
        %733 = vmatpush.msra.mxu0 %v660
        %734 = vmatpush.msra.mxu0 %v656
        %735 = vmatpush.msra.mxu0 %v652
        %736 = vmatpush.msra.mxu0 %v648
        %737 = vmatpush.msra.mxu0 %v644
        %738 = vmatpush.msra.mxu0 %v640
        %739 = vmatmul.f32.gmra.mxu0 %v633
        %v740 = vpop.f32.mrf.mxu0
        %v741 = vadd.f32 0.0, %v740
        %742 = vdwg.mxu0
        %743 = vmatpush.msra.mxu0 %v701
        %744 = vmatpush.msra.mxu0 %v697
        %745 = vmatpush.msra.mxu0 %v693
        %746 = vmatpush.msra.mxu0 %v689
        %747 = vmatpush.msra.mxu0 %v685
        %748 = vmatpush.msra.mxu0 %v681
        %749 = vmatpush.msra.mxu0 %v677
        %750 = vmatpush.msra.mxu0 %v673
        %751 = vmatpush.msra.mxu0 %v669
        %752 = vmatpush.msra.mxu0 %v665
        %753 = vmatpush.msra.mxu0 %v661
        %754 = vmatpush.msra.mxu0 %v657
        %755 = vmatpush.msra.mxu0 %v653
        %756 = vmatpush.msra.mxu0 %v649
        %757 = vmatpush.msra.mxu0 %v645
        %758 = vmatpush.msra.mxu0 %v641
        %759 = vmatmul.f32.gmra.mxu0 %v633
        %v760 = vpop.f32.mrf.mxu0
        %v761 = vadd.f32 0.0, %v760
        %762 = vdwg.mxu0
        %763 = vmatpush.msra.mxu0 %v702
        %764 = vmatpush.msra.mxu0 %v698
        %765 = vmatpush.msra.mxu0 %v694
        %766 = vmatpush.msra.mxu0 %v690
        %767 = vmatpush.msra.mxu0 %v686
        %768 = vmatpush.msra.mxu0 %v682
        %769 = vmatpush.msra.mxu0 %v678
        %770 = vmatpush.msra.mxu0 %v674
        %771 = vmatpush.msra.mxu0 %v670
        %772 = vmatpush.msra.mxu0 %v666
        %773 = vmatpush.msra.mxu0 %v662
        %774 = vmatpush.msra.mxu0 %v658
        %775 = vmatpush.msra.mxu0 %v654
        %776 = vmatpush.msra.mxu0 %v650
        %777 = vmatpush.msra.mxu0 %v646
        %778 = vmatpush.msra.mxu0 %v642
        %779 = vmatmul.f32.gmra.mxu0 %v633
        %v780 = vpop.f32.mrf.mxu0
        %v781 = vadd.f32 0.0, %v780
        %782 = vdwg.mxu0
        %v783 = vadd.f32 %v635, %v721
        %v784 = vadd.f32 %v636, %v741
        %v785 = vadd.f32 %v637, %v761
        %v786 = vadd.f32 %v638, %v781
        %v787 = vxor.u32 %v783, 2147483648
        %v788 = vxor.u32 %v784, 2147483648
        %v789 = vxor.u32 %v785, 2147483648
        %v790 = vmul.f32 %v787, 1.442695
        %v791 = vpow.pop %v790
        %v792 = vmul.f32 %v788, 1.442695
        %v793 = vpow.pop %v792
        %v794 = vmul.f32 %v789, 1.442695
        %v795 = vpow.pop %v794
        %v796 = vadd.f32 %v791, 1.0
        %v797 = vadd.f32 %v793, 1.0
        %v798 = vadd.f32 %v795, 1.0
        %v799 = vrcp.pop %v796
        %v800 = vmul.f32 %v796, %v799
        %v801 = vsub.f32 1.0, %v800
        %v802 = vmul.f32 %v799, %v801
        %v803 = vadd.f32 %v799, %v802
        %vm804 = vweird.f32 %v796
        %vm805 = vweird.f32 %v799
        %vm806 = vmor %vm804, %vm805
        %v807 = vsel %vm806, %v799, %v803
        %v808 = vand.u32 2147483647, %v796
        %vm809 = vcmp.eq.f32.partialorder %v808, 8.507059e+37
        %v810 = vand.u32 %v796, 2147483648
        %v811 = vor.u32 1.1754944e-38, %v810
        %v812 = vsel %vm809, %v811, %v807
        %v813 = vmul.f32 1.0, %v812
        %v814 = vrcp.pop %v797
        %v815 = vmul.f32 %v797, %v814
        %v816 = vsub.f32 1.0, %v815
        %v817 = vmul.f32 %v814, %v816
        %v818 = vadd.f32 %v814, %v817
        %vm819 = vweird.f32 %v797
        %vm820 = vweird.f32 %v814
        %vm821 = vmor %vm819, %vm820
        %v822 = vsel %vm821, %v814, %v818
        %v823 = vand.u32 2147483647, %v797
        %vm824 = vcmp.eq.f32.partialorder %v823, 8.507059e+37
        %v825 = vand.u32 %v797, 2147483648
        %v826 = vor.u32 1.1754944e-38, %v825
        %v827 = vsel %vm824, %v826, %v822
        %v828 = vmul.f32 1.0, %v827
        %v829 = vrcp.pop %v798
        %v830 = vmul.f32 %v798, %v829
        %v831 = vsub.f32 1.0, %v830
        %v832 = vmul.f32 %v829, %v831
        %v833 = vadd.f32 %v829, %v832
        %vm834 = vweird.f32 %v798
        %vm835 = vweird.f32 %v829
        %vm836 = vmor %vm834, %vm835
        %v837 = vsel %vm836, %v829, %v833
        %v838 = vand.u32 2147483647, %v798
        %vm839 = vcmp.eq.f32.partialorder %v838, 8.507059e+37
        %v840 = vand.u32 %v798, 2147483648
        %v841 = vor.u32 1.1754944e-38, %v840
        %v842 = vsel %vm839, %v841, %v837
        %v843 = vmul.f32 1.0, %v842
        %v844 = vtanh.pop %v786
        %v845 = vmul.f32 %v828, %v634
        %v846 = vmul.f32 %v813, %v844
        %v847 = vadd.f32 %v845, %v846
        %v848 = vtanh.pop %v847
        %v849 = vmul.f32 %v843, %v848
        %v850 = vld [vmem:[#allocation4 + $0x20] sm:$0xff]
        %v851 = vld [vmem:[#allocation4 + $0x28] sm:$0xff]
        %v852 = vld [vmem:[#allocation4 + $0x30] sm:$0xff]
        %v853 = vld [vmem:[#allocation4 + $0x38] sm:$0xff]
        %854 = vmatpush.msra.mxu0 %v699
        %855 = vmatpush.msra.mxu0 %v695
        %856 = vmatpush.msra.mxu0 %v691
        %857 = vmatpush.msra.mxu0 %v687
        %858 = vmatpush.msra.mxu0 %v683
        %859 = vmatpush.msra.mxu0 %v679
        %860 = vmatpush.msra.mxu0 %v675
        %861 = vmatpush.msra.mxu0 %v671
        %862 = vmatpush.msra.mxu0 %v667
        %863 = vmatpush.msra.mxu0 %v663
        %864 = vmatpush.msra.mxu0 %v659
        %865 = vmatpush.msra.mxu0 %v655
        %866 = vmatpush.msra.mxu0 %v651
        %867 = vmatpush.msra.mxu0 %v647
        %868 = vmatpush.msra.mxu0 %v643
        %869 = vmatpush.msra.mxu0 %v639
        %870 = vmatmul.f32.gmra.mxu0 %v849
        %v871 = vpop.f32.mrf.mxu0
        %v872 = vadd.f32 0.0, %v871
        %873 = vdwg.mxu0
        %874 = vmatpush.msra.mxu0 %v700
        %875 = vmatpush.msra.mxu0 %v696
        %876 = vmatpush.msra.mxu0 %v692
        %877 = vmatpush.msra.mxu0 %v688
        %878 = vmatpush.msra.mxu0 %v684
        %879 = vmatpush.msra.mxu0 %v680
        %880 = vmatpush.msra.mxu0 %v676
        %881 = vmatpush.msra.mxu0 %v672
        %882 = vmatpush.msra.mxu0 %v668
        %883 = vmatpush.msra.mxu0 %v664
        %884 = vmatpush.msra.mxu0 %v660
        %885 = vmatpush.msra.mxu0 %v656
        %886 = vmatpush.msra.mxu0 %v652
        %887 = vmatpush.msra.mxu0 %v648
        %888 = vmatpush.msra.mxu0 %v644
        %889 = vmatpush.msra.mxu0 %v640
        %890 = vmatmul.f32.gmra.mxu0 %v849
        %v891 = vpop.f32.mrf.mxu0
        %v892 = vadd.f32 0.0, %v891
        %893 = vdwg.mxu0
        %894 = vmatpush.msra.mxu0 %v701
        %895 = vmatpush.msra.mxu0 %v697
        %896 = vmatpush.msra.mxu0 %v693
        %897 = vmatpush.msra.mxu0 %v689
        %898 = vmatpush.msra.mxu0 %v685
        %899 = vmatpush.msra.mxu0 %v681
        %900 = vmatpush.msra.mxu0 %v677
        %901 = vmatpush.msra.mxu0 %v673
        %902 = vmatpush.msra.mxu0 %v669
        %903 = vmatpush.msra.mxu0 %v665
        %904 = vmatpush.msra.mxu0 %v661
        %905 = vmatpush.msra.mxu0 %v657
        %906 = vmatpush.msra.mxu0 %v653
        %907 = vmatpush.msra.mxu0 %v649
        %908 = vmatpush.msra.mxu0 %v645
        %909 = vmatpush.msra.mxu0 %v641
        %910 = vmatmul.f32.gmra.mxu0 %v849
        %v911 = vpop.f32.mrf.mxu0
        %v912 = vadd.f32 0.0, %v911
        %913 = vdwg.mxu0
        %914 = vmatpush.msra.mxu0 %v702
        %915 = vmatpush.msra.mxu0 %v698
        %916 = vmatpush.msra.mxu0 %v694
        %917 = vmatpush.msra.mxu0 %v690
        %918 = vmatpush.msra.mxu0 %v686
        %919 = vmatpush.msra.mxu0 %v682
        %920 = vmatpush.msra.mxu0 %v678
        %921 = vmatpush.msra.mxu0 %v674
        %922 = vmatpush.msra.mxu0 %v670
        %923 = vmatpush.msra.mxu0 %v666
        %924 = vmatpush.msra.mxu0 %v662
        %925 = vmatpush.msra.mxu0 %v658
        %926 = vmatpush.msra.mxu0 %v654
        %927 = vmatpush.msra.mxu0 %v650
        %928 = vmatpush.msra.mxu0 %v646
        %929 = vmatpush.msra.mxu0 %v642
        %930 = vmatmul.f32.gmra.mxu0 %v849
        %v931 = vpop.f32.mrf.mxu0
        %v932 = vadd.f32 0.0, %v931
        %933 = vdwg.mxu0
        %v934 = vadd.f32 %v850, %v872
        %v935 = vadd.f32 %v851, %v892
        %v936 = vadd.f32 %v852, %v912
        %v937 = vadd.f32 %v853, %v932
        %v938 = vxor.u32 %v934, 2147483648
        %v939 = vxor.u32 %v935, 2147483648
        %v940 = vxor.u32 %v936, 2147483648
        %v941 = vmul.f32 %v938, 1.442695
        %v942 = vpow.pop %v941
        %v943 = vmul.f32 %v939, 1.442695
        %v944 = vpow.pop %v943
        %v945 = vmul.f32 %v940, 1.442695
        %v946 = vpow.pop %v945
        %v947 = vadd.f32 %v942, 1.0
        %v948 = vadd.f32 %v944, 1.0
        %v949 = vadd.f32 %v946, 1.0
        %v950 = vrcp.pop %v947
        %v951 = vmul.f32 %v947, %v950
        %v952 = vsub.f32 1.0, %v951
        %v953 = vmul.f32 %v950, %v952
        %v954 = vadd.f32 %v950, %v953
        %vm955 = vweird.f32 %v947
        %vm956 = vweird.f32 %v950
        %vm957 = vmor %vm955, %vm956
        %v958 = vsel %vm957, %v950, %v954
        %v959 = vand.u32 2147483647, %v947
        %vm960 = vcmp.eq.f32.partialorder %v959, 8.507059e+37
        %v961 = vand.u32 %v947, 2147483648
        %v962 = vor.u32 1.1754944e-38, %v961
        %v963 = vsel %vm960, %v962, %v958
        %v964 = vmul.f32 1.0, %v963
        %v965 = vrcp.pop %v948
        %v966 = vmul.f32 %v948, %v965
        %v967 = vsub.f32 1.0, %v966
        %v968 = vmul.f32 %v965, %v967
        %v969 = vadd.f32 %v965, %v968
        %vm970 = vweird.f32 %v948
        %vm971 = vweird.f32 %v965
        %vm972 = vmor %vm970, %vm971
        %v973 = vsel %vm972, %v965, %v969
        %v974 = vand.u32 2147483647, %v948
        %vm975 = vcmp.eq.f32.partialorder %v974, 8.507059e+37
        %v976 = vand.u32 %v948, 2147483648
        %v977 = vor.u32 1.1754944e-38, %v976
        %v978 = vsel %vm975, %v977, %v973
        %v979 = vmul.f32 1.0, %v978
        %v980 = vrcp.pop %v949
        %v981 = vmul.f32 %v949, %v980
        %v982 = vsub.f32 1.0, %v981
        %v983 = vmul.f32 %v980, %v982
        %v984 = vadd.f32 %v980, %v983
        %vm985 = vweird.f32 %v949
        %vm986 = vweird.f32 %v980
        %vm987 = vmor %vm985, %vm986
        %v988 = vsel %vm987, %v980, %v984
        %v989 = vand.u32 2147483647, %v949
        %vm990 = vcmp.eq.f32.partialorder %v989, 8.507059e+37
        %v991 = vand.u32 %v949, 2147483648
        %v992 = vor.u32 1.1754944e-38, %v991
        %v993 = vsel %vm990, %v992, %v988
        %v994 = vmul.f32 1.0, %v993
        %v995 = vtanh.pop %v937
        %v996 = vmul.f32 %v979, %v847
        %v997 = vmul.f32 %v964, %v995
        %v998 = vadd.f32 %v996, %v997
        %v999 = vtanh.pop %v998
        %v1000 = vmul.f32 %v994, %v999
        %v1001 = vld [vmem:[#allocation4 + $0x40] sm:$0xff]
        %v1002 = vld [vmem:[#allocation4 + $0x48] sm:$0xff]
        %v1003 = vld [vmem:[#allocation4 + $0x50] sm:$0xff]
        %v1004 = vld [vmem:[#allocation4 + $0x58] sm:$0xff]
        %1005 = vmatpush.msra.mxu0 %v699
        %1006 = vmatpush.msra.mxu0 %v695
        %1007 = vmatpush.msra.mxu0 %v691
        %1008 = vmatpush.msra.mxu0 %v687
        %1009 = vmatpush.msra.mxu0 %v683
        %1010 = vmatpush.msra.mxu0 %v679
        %1011 = vmatpush.msra.mxu0 %v675
        %1012 = vmatpush.msra.mxu0 %v671
        %1013 = vmatpush.msra.mxu0 %v667
        %1014 = vmatpush.msra.mxu0 %v663
        %1015 = vmatpush.msra.mxu0 %v659
        %1016 = vmatpush.msra.mxu0 %v655
        %1017 = vmatpush.msra.mxu0 %v651
        %1018 = vmatpush.msra.mxu0 %v647
        %1019 = vmatpush.msra.mxu0 %v643
        %1020 = vmatpush.msra.mxu0 %v639
        %1021 = vmatmul.f32.gmra.mxu0 %v1000
        %v1022 = vpop.f32.mrf.mxu0
        %v1023 = vadd.f32 0.0, %v1022
        %1024 = vdwg.mxu0
        %1025 = vmatpush.msra.mxu0 %v700
        %1026 = vmatpush.msra.mxu0 %v696
        %1027 = vmatpush.msra.mxu0 %v692
        %1028 = vmatpush.msra.mxu0 %v688
        %1029 = vmatpush.msra.mxu0 %v684
        %1030 = vmatpush.msra.mxu0 %v680
        %1031 = vmatpush.msra.mxu0 %v676
        %1032 = vmatpush.msra.mxu0 %v672
        %1033 = vmatpush.msra.mxu0 %v668
        %1034 = vmatpush.msra.mxu0 %v664
        %1035 = vmatpush.msra.mxu0 %v660
        %1036 = vmatpush.msra.mxu0 %v656
        %1037 = vmatpush.msra.mxu0 %v652
        %1038 = vmatpush.msra.mxu0 %v648
        %1039 = vmatpush.msra.mxu0 %v644
        %1040 = vmatpush.msra.mxu0 %v640
        %1041 = vmatmul.f32.gmra.mxu0 %v1000
        %v1042 = vpop.f32.mrf.mxu0
        %v1043 = vadd.f32 0.0, %v1042
        %1044 = vdwg.mxu0
        %1045 = vmatpush.msra.mxu0 %v701
        %1046 = vmatpush.msra.mxu0 %v697
        %1047 = vmatpush.msra.mxu0 %v693
        %1048 = vmatpush.msra.mxu0 %v689
        %1049 = vmatpush.msra.mxu0 %v685
        %1050 = vmatpush.msra.mxu0 %v681
        %1051 = vmatpush.msra.mxu0 %v677
        %1052 = vmatpush.msra.mxu0 %v673
        %1053 = vmatpush.msra.mxu0 %v669
        %1054 = vmatpush.msra.mxu0 %v665
        %1055 = vmatpush.msra.mxu0 %v661
        %1056 = vmatpush.msra.mxu0 %v657
        %1057 = vmatpush.msra.mxu0 %v653
        %1058 = vmatpush.msra.mxu0 %v649
        %1059 = vmatpush.msra.mxu0 %v645
        %1060 = vmatpush.msra.mxu0 %v641
        %1061 = vmatmul.f32.gmra.mxu0 %v1000
        %v1062 = vpop.f32.mrf.mxu0
        %v1063 = vadd.f32 0.0, %v1062
        %1064 = vdwg.mxu0
        %1065 = vmatpush.msra.mxu0 %v702
        %1066 = vmatpush.msra.mxu0 %v698
        %1067 = vmatpush.msra.mxu0 %v694
        %1068 = vmatpush.msra.mxu0 %v690
        %1069 = vmatpush.msra.mxu0 %v686
        %1070 = vmatpush.msra.mxu0 %v682
        %1071 = vmatpush.msra.mxu0 %v678
        %1072 = vmatpush.msra.mxu0 %v674
        %1073 = vmatpush.msra.mxu0 %v670
        %1074 = vmatpush.msra.mxu0 %v666
        %1075 = vmatpush.msra.mxu0 %v662
        %1076 = vmatpush.msra.mxu0 %v658
        %1077 = vmatpush.msra.mxu0 %v654
        %1078 = vmatpush.msra.mxu0 %v650
        %1079 = vmatpush.msra.mxu0 %v646
        %1080 = vmatpush.msra.mxu0 %v642
        %1081 = vmatmul.f32.gmra.mxu0 %v1000
        %v1082 = vpop.f32.mrf.mxu0
        %v1083 = vadd.f32 0.0, %v1082
        %1084 = vdwg.mxu0
        %v1085 = vadd.f32 %v1001, %v1023
        %v1086 = vadd.f32 %v1002, %v1043
        %v1087 = vadd.f32 %v1003, %v1063
        %v1088 = vadd.f32 %v1004, %v1083
        %v1089 = vxor.u32 %v1085, 2147483648
        %v1090 = vxor.u32 %v1086, 2147483648
        %v1091 = vxor.u32 %v1087, 2147483648
        %v1092 = vmul.f32 %v1089, 1.442695
        %v1093 = vpow.pop %v1092
        %v1094 = vmul.f32 %v1090, 1.442695
        %v1095 = vpow.pop %v1094
        %v1096 = vmul.f32 %v1091, 1.442695
        %v1097 = vpow.pop %v1096
        %v1098 = vadd.f32 %v1093, 1.0
        %v1099 = vadd.f32 %v1095, 1.0
        %v1100 = vadd.f32 %v1097, 1.0
        %v1101 = vrcp.pop %v1098
        %v1102 = vmul.f32 %v1098, %v1101
        %v1103 = vsub.f32 1.0, %v1102
        %v1104 = vmul.f32 %v1101, %v1103
        %v1105 = vadd.f32 %v1101, %v1104
        %vm1106 = vweird.f32 %v1098
        %vm1107 = vweird.f32 %v1101
        %vm1108 = vmor %vm1106, %vm1107
        %v1109 = vsel %vm1108, %v1101, %v1105
        %v1110 = vand.u32 2147483647, %v1098
        %vm1111 = vcmp.eq.f32.partialorder %v1110, 8.507059e+37
        %v1112 = vand.u32 %v1098, 2147483648
        %v1113 = vor.u32 1.1754944e-38, %v1112
        %v1114 = vsel %vm1111, %v1113, %v1109
        %v1115 = vmul.f32 1.0, %v1114
        %v1116 = vrcp.pop %v1099
        %v1117 = vmul.f32 %v1099, %v1116
        %v1118 = vsub.f32 1.0, %v1117
        %v1119 = vmul.f32 %v1116, %v1118
        %v1120 = vadd.f32 %v1116, %v1119
        %vm1121 = vweird.f32 %v1099
        %vm1122 = vweird.f32 %v1116
        %vm1123 = vmor %vm1121, %vm1122
        %v1124 = vsel %vm1123, %v1116, %v1120
        %v1125 = vand.u32 2147483647, %v1099
        %vm1126 = vcmp.eq.f32.partialorder %v1125, 8.507059e+37
        %v1127 = vand.u32 %v1099, 2147483648
        %v1128 = vor.u32 1.1754944e-38, %v1127
        %v1129 = vsel %vm1126, %v1128, %v1124
        %v1130 = vmul.f32 1.0, %v1129
        %v1131 = vrcp.pop %v1100
        %v1132 = vmul.f32 %v1100, %v1131
        %v1133 = vsub.f32 1.0, %v1132
        %v1134 = vmul.f32 %v1131, %v1133
        %v1135 = vadd.f32 %v1131, %v1134
        %vm1136 = vweird.f32 %v1100
        %vm1137 = vweird.f32 %v1131
        %vm1138 = vmor %vm1136, %vm1137
        %v1139 = vsel %vm1138, %v1131, %v1135
        %v1140 = vand.u32 2147483647, %v1100
        %vm1141 = vcmp.eq.f32.partialorder %v1140, 8.507059e+37
        %v1142 = vand.u32 %v1100, 2147483648
        %v1143 = vor.u32 1.1754944e-38, %v1142
        %v1144 = vsel %vm1141, %v1143, %v1139
        %v1145 = vmul.f32 1.0, %v1144
        %v1146 = vtanh.pop %v1088
        %v1147 = vmul.f32 %v1130, %v998
        %v1148 = vmul.f32 %v1115, %v1146
        %v1149 = vadd.f32 %v1147, %v1148
        %v1150 = vtanh.pop %v1149
        %v1151 = vmul.f32 %v1145, %v1150
        %v1152 = vld [vmem:[#allocation4 + $0x60] sm:$0xff]
        %v1153 = vld [vmem:[#allocation4 + $0x68] sm:$0xff]
        %v1154 = vld [vmem:[#allocation4 + $0x70] sm:$0xff]
        %v1155 = vld [vmem:[#allocation4 + $0x78] sm:$0xff]
        %1156 = vmatpush.msra.mxu0 %v699
        %1157 = vmatpush.msra.mxu0 %v695
        %1158 = vmatpush.msra.mxu0 %v691
        %1159 = vmatpush.msra.mxu0 %v687
        %1160 = vmatpush.msra.mxu0 %v683
        %1161 = vmatpush.msra.mxu0 %v679
        %1162 = vmatpush.msra.mxu0 %v675
        %1163 = vmatpush.msra.mxu0 %v671
        %1164 = vmatpush.msra.mxu0 %v667
        %1165 = vmatpush.msra.mxu0 %v663
        %1166 = vmatpush.msra.mxu0 %v659
        %1167 = vmatpush.msra.mxu0 %v655
        %1168 = vmatpush.msra.mxu0 %v651
        %1169 = vmatpush.msra.mxu0 %v647
        %1170 = vmatpush.msra.mxu0 %v643
        %1171 = vmatpush.msra.mxu0 %v639
        %1172 = vmatmul.f32.gmra.mxu0 %v1151
        %v1173 = vpop.f32.mrf.mxu0
        %v1174 = vadd.f32 0.0, %v1173
        %1175 = vdwg.mxu0
        %1176 = vmatpush.msra.mxu0 %v700
        %1177 = vmatpush.msra.mxu0 %v696
        %1178 = vmatpush.msra.mxu0 %v692
        %1179 = vmatpush.msra.mxu0 %v688
        %1180 = vmatpush.msra.mxu0 %v684
        %1181 = vmatpush.msra.mxu0 %v680
        %1182 = vmatpush.msra.mxu0 %v676
        %1183 = vmatpush.msra.mxu0 %v672
        %1184 = vmatpush.msra.mxu0 %v668
        %1185 = vmatpush.msra.mxu0 %v664
        %1186 = vmatpush.msra.mxu0 %v660
        %1187 = vmatpush.msra.mxu0 %v656
        %1188 = vmatpush.msra.mxu0 %v652
        %1189 = vmatpush.msra.mxu0 %v648
        %1190 = vmatpush.msra.mxu0 %v644
        %1191 = vmatpush.msra.mxu0 %v640
        %1192 = vmatmul.f32.gmra.mxu0 %v1151
        %v1193 = vpop.f32.mrf.mxu0
        %v1194 = vadd.f32 0.0, %v1193
        %1195 = vdwg.mxu0
        %1196 = vmatpush.msra.mxu0 %v701
        %1197 = vmatpush.msra.mxu0 %v697
        %1198 = vmatpush.msra.mxu0 %v693
        %1199 = vmatpush.msra.mxu0 %v689
        %1200 = vmatpush.msra.mxu0 %v685
        %1201 = vmatpush.msra.mxu0 %v681
        %1202 = vmatpush.msra.mxu0 %v677
        %1203 = vmatpush.msra.mxu0 %v673
        %1204 = vmatpush.msra.mxu0 %v669
        %1205 = vmatpush.msra.mxu0 %v665
        %1206 = vmatpush.msra.mxu0 %v661
        %1207 = vmatpush.msra.mxu0 %v657
        %1208 = vmatpush.msra.mxu0 %v653
        %1209 = vmatpush.msra.mxu0 %v649
        %1210 = vmatpush.msra.mxu0 %v645
        %1211 = vmatpush.msra.mxu0 %v641
        %1212 = vmatmul.f32.gmra.mxu0 %v1151
        %v1213 = vpop.f32.mrf.mxu0
        %v1214 = vadd.f32 0.0, %v1213
        %1215 = vdwg.mxu0
        %1216 = vmatpush.msra.mxu0 %v702
        %1217 = vmatpush.msra.mxu0 %v698
        %1218 = vmatpush.msra.mxu0 %v694
        %1219 = vmatpush.msra.mxu0 %v690
        %1220 = vmatpush.msra.mxu0 %v686
        %1221 = vmatpush.msra.mxu0 %v682
        %1222 = vmatpush.msra.mxu0 %v678
        %1223 = vmatpush.msra.mxu0 %v674
        %1224 = vmatpush.msra.mxu0 %v670
        %1225 = vmatpush.msra.mxu0 %v666
        %1226 = vmatpush.msra.mxu0 %v662
        %1227 = vmatpush.msra.mxu0 %v658
        %1228 = vmatpush.msra.mxu0 %v654
        %1229 = vmatpush.msra.mxu0 %v650
        %1230 = vmatpush.msra.mxu0 %v646
        %1231 = vmatpush.msra.mxu0 %v642
        %1232 = vmatmul.f32.gmra.mxu0 %v1151
        %v1233 = vpop.f32.mrf.mxu0
        %v1234 = vadd.f32 0.0, %v1233
        %1235 = vdwg.mxu0
        %v1236 = vadd.f32 %v1152, %v1174
        %v1237 = vadd.f32 %v1153, %v1194
        %v1238 = vadd.f32 %v1154, %v1214
        %v1239 = vadd.f32 %v1155, %v1234
        %v1240 = vxor.u32 %v1236, 2147483648
        %v1241 = vxor.u32 %v1237, 2147483648
        %v1242 = vxor.u32 %v1238, 2147483648
        %v1243 = vmul.f32 %v1240, 1.442695
        %v1244 = vpow.pop %v1243
        %v1245 = vmul.f32 %v1241, 1.442695
        %v1246 = vpow.pop %v1245
        %v1247 = vmul.f32 %v1242, 1.442695
        %v1248 = vpow.pop %v1247
        %v1249 = vadd.f32 %v1244, 1.0
        %v1250 = vadd.f32 %v1246, 1.0
        %v1251 = vadd.f32 %v1248, 1.0
        %v1252 = vrcp.pop %v1249
        %v1253 = vmul.f32 %v1249, %v1252
        %v1254 = vsub.f32 1.0, %v1253
        %v1255 = vmul.f32 %v1252, %v1254
        %v1256 = vadd.f32 %v1252, %v1255
        %vm1257 = vweird.f32 %v1249
        %vm1258 = vweird.f32 %v1252
        %vm1259 = vmor %vm1257, %vm1258
        %v1260 = vsel %vm1259, %v1252, %v1256
        %v1261 = vand.u32 2147483647, %v1249
        %vm1262 = vcmp.eq.f32.partialorder %v1261, 8.507059e+37
        %v1263 = vand.u32 %v1249, 2147483648
        %v1264 = vor.u32 1.1754944e-38, %v1263
        %v1265 = vsel %vm1262, %v1264, %v1260
        %v1266 = vmul.f32 1.0, %v1265
        %v1267 = vrcp.pop %v1250
        %v1268 = vmul.f32 %v1250, %v1267
        %v1269 = vsub.f32 1.0, %v1268
        %v1270 = vmul.f32 %v1267, %v1269
        %v1271 = vadd.f32 %v1267, %v1270
        %vm1272 = vweird.f32 %v1250
        %vm1273 = vweird.f32 %v1267
        %vm1274 = vmor %vm1272, %vm1273
        %v1275 = vsel %vm1274, %v1267, %v1271
        %v1276 = vand.u32 2147483647, %v1250
        %vm1277 = vcmp.eq.f32.partialorder %v1276, 8.507059e+37
        %v1278 = vand.u32 %v1250, 2147483648
        %v1279 = vor.u32 1.1754944e-38, %v1278
        %v1280 = vsel %vm1277, %v1279, %v1275
        %v1281 = vmul.f32 1.0, %v1280
        %v1282 = vrcp.pop %v1251
        %v1283 = vmul.f32 %v1251, %v1282
        %v1284 = vsub.f32 1.0, %v1283
        %v1285 = vmul.f32 %v1282, %v1284
        %v1286 = vadd.f32 %v1282, %v1285
        %vm1287 = vweird.f32 %v1251
        %vm1288 = vweird.f32 %v1282
        %vm1289 = vmor %vm1287, %vm1288
        %v1290 = vsel %vm1289, %v1282, %v1286
        %v1291 = vand.u32 2147483647, %v1251
        %vm1292 = vcmp.eq.f32.partialorder %v1291, 8.507059e+37
        %v1293 = vand.u32 %v1251, 2147483648
        %v1294 = vor.u32 1.1754944e-38, %v1293
        %v1295 = vsel %vm1292, %v1294, %v1290
        %v1296 = vmul.f32 1.0, %v1295
        %v1297 = vtanh.pop %v1239
        %v1298 = vmul.f32 %v1281, %v1149
        %v1299 = vmul.f32 %v1266, %v1297
        %v1300 = vadd.f32 %v1298, %v1299
        %v1301 = vtanh.pop %v1300
        %v1302 = vmul.f32 %v1296, %v1301
        %s1303 = smul.u32 %s25, 5
        %s1304 = sadd.s32 %s1303, 3
        %p1305 = scmp.lt.s32.totalorder %s1304, 8
        %s1306 = scalar_select %p1305, 1, 0
        %s1307 = scvt.s32.f32 %s1306
        %v1308 = vstv %s1307
        %v1309 = vmul.f32 %v1300, %v1308
        %s1310 = ssub.f32 1.0, %s1307
        %v1311 = vstv %s1310
        %v1312 = vmul.f32 %v1149, %v1311
        %v1313 = vadd.f32 %v1309, %v1312
        %v1314 = vmul.f32 %v1302, %v1308
        %v1315 = vmul.f32 %v1151, %v1311
        %v1316 = vadd.f32 %v1314, %v1315
        %v1317 = vld [vmem:[#allocation4 + $0x80] sm:$0xff]
        %v1318 = vld [vmem:[#allocation4 + $0x88] sm:$0xff]
        %v1319 = vld [vmem:[#allocation4 + $0x90] sm:$0xff]
        %v1320 = vld [vmem:[#allocation4 + $0x98] sm:$0xff]
        %1321 = vmatpush.msra.mxu0 %v699
        %1322 = vmatpush.msra.mxu0 %v695
        %1323 = vmatpush.msra.mxu0 %v691
        %1324 = vmatpush.msra.mxu0 %v687
        %1325 = vmatpush.msra.mxu0 %v683
        %1326 = vmatpush.msra.mxu0 %v679
        %1327 = vmatpush.msra.mxu0 %v675
        %1328 = vmatpush.msra.mxu0 %v671
        %1329 = vmatpush.msra.mxu0 %v667
        %1330 = vmatpush.msra.mxu0 %v663
        %1331 = vmatpush.msra.mxu0 %v659
        %1332 = vmatpush.msra.mxu0 %v655
        %1333 = vmatpush.msra.mxu0 %v651
        %1334 = vmatpush.msra.mxu0 %v647
        %1335 = vmatpush.msra.mxu0 %v643
        %1336 = vmatpush.msra.mxu0 %v639
        %1337 = vmatmul.f32.gmra.mxu0 %v1316
        %v1338 = vpop.f32.mrf.mxu0
        %v1339 = vadd.f32 0.0, %v1338
        %1340 = vdwg.mxu0
        %1341 = vmatpush.msra.mxu0 %v700
        %1342 = vmatpush.msra.mxu0 %v696
        %1343 = vmatpush.msra.mxu0 %v692
        %1344 = vmatpush.msra.mxu0 %v688
        %1345 = vmatpush.msra.mxu0 %v684
        %1346 = vmatpush.msra.mxu0 %v680
        %1347 = vmatpush.msra.mxu0 %v676
        %1348 = vmatpush.msra.mxu0 %v672
        %1349 = vmatpush.msra.mxu0 %v668
        %1350 = vmatpush.msra.mxu0 %v664
        %1351 = vmatpush.msra.mxu0 %v660
        %1352 = vmatpush.msra.mxu0 %v656
        %1353 = vmatpush.msra.mxu0 %v652
        %1354 = vmatpush.msra.mxu0 %v648
        %1355 = vmatpush.msra.mxu0 %v644
        %1356 = vmatpush.msra.mxu0 %v640
        %1357 = vmatmul.f32.gmra.mxu0 %v1316
        %v1358 = vpop.f32.mrf.mxu0
        %v1359 = vadd.f32 0.0, %v1358
        %1360 = vdwg.mxu0
        %1361 = vmatpush.msra.mxu0 %v701
        %1362 = vmatpush.msra.mxu0 %v697
        %1363 = vmatpush.msra.mxu0 %v693
        %1364 = vmatpush.msra.mxu0 %v689
        %1365 = vmatpush.msra.mxu0 %v685
        %1366 = vmatpush.msra.mxu0 %v681
        %1367 = vmatpush.msra.mxu0 %v677
        %1368 = vmatpush.msra.mxu0 %v673
        %1369 = vmatpush.msra.mxu0 %v669
        %1370 = vmatpush.msra.mxu0 %v665
        %1371 = vmatpush.msra.mxu0 %v661
        %1372 = vmatpush.msra.mxu0 %v657
        %1373 = vmatpush.msra.mxu0 %v653
        %1374 = vmatpush.msra.mxu0 %v649
        %1375 = vmatpush.msra.mxu0 %v645
        %1376 = vmatpush.msra.mxu0 %v641
        %1377 = vmatmul.f32.gmra.mxu0 %v1316
        %v1378 = vpop.f32.mrf.mxu0
        %v1379 = vadd.f32 0.0, %v1378
        %1380 = vdwg.mxu0
        %1381 = vmatpush.msra.mxu0 %v702
        %1382 = vmatpush.msra.mxu0 %v698
        %1383 = vmatpush.msra.mxu0 %v694
        %1384 = vmatpush.msra.mxu0 %v690
        %1385 = vmatpush.msra.mxu0 %v686
        %1386 = vmatpush.msra.mxu0 %v682
        %1387 = vmatpush.msra.mxu0 %v678
        %1388 = vmatpush.msra.mxu0 %v674
        %1389 = vmatpush.msra.mxu0 %v670
        %1390 = vmatpush.msra.mxu0 %v666
        %1391 = vmatpush.msra.mxu0 %v662
        %1392 = vmatpush.msra.mxu0 %v658
        %1393 = vmatpush.msra.mxu0 %v654
        %1394 = vmatpush.msra.mxu0 %v650
        %1395 = vmatpush.msra.mxu0 %v646
        %1396 = vmatpush.msra.mxu0 %v642
        %1397 = vmatmul.f32.gmra.mxu0 %v1316
        %v1398 = vpop.f32.mrf.mxu0
        %v1399 = vadd.f32 0.0, %v1398
        %1400 = vdwg.mxu0
        %v1401 = vadd.f32 %v1317, %v1339
        %v1402 = vadd.f32 %v1318, %v1359
        %v1403 = vadd.f32 %v1319, %v1379
        %v1404 = vadd.f32 %v1320, %v1399
        %v1405 = vxor.u32 %v1401, 2147483648
        %v1406 = vxor.u32 %v1402, 2147483648
        %v1407 = vxor.u32 %v1403, 2147483648
        %v1408 = vmul.f32 %v1405, 1.442695
        %v1409 = vpow.pop %v1408
        %v1410 = vmul.f32 %v1406, 1.442695
        %v1411 = vpow.pop %v1410
        %v1412 = vmul.f32 %v1407, 1.442695
        %v1413 = vpow.pop %v1412
        %v1414 = vadd.f32 %v1409, 1.0
        %v1415 = vadd.f32 %v1411, 1.0
        %v1416 = vadd.f32 %v1413, 1.0
        %v1417 = vrcp.pop %v1414
        %v1418 = vmul.f32 %v1414, %v1417
        %v1419 = vsub.f32 1.0, %v1418
        %v1420 = vmul.f32 %v1417, %v1419
        %v1421 = vadd.f32 %v1417, %v1420
        %vm1422 = vweird.f32 %v1414
        %vm1423 = vweird.f32 %v1417
        %vm1424 = vmor %vm1422, %vm1423
        %v1425 = vsel %vm1424, %v1417, %v1421
        %v1426 = vand.u32 2147483647, %v1414
        %vm1427 = vcmp.eq.f32.partialorder %v1426, 8.507059e+37
        %v1428 = vand.u32 %v1414, 2147483648
        %v1429 = vor.u32 1.1754944e-38, %v1428
        %v1430 = vsel %vm1427, %v1429, %v1425
        %v1431 = vmul.f32 1.0, %v1430
        %v1432 = vrcp.pop %v1415
        %v1433 = vmul.f32 %v1415, %v1432
        %v1434 = vsub.f32 1.0, %v1433
        %v1435 = vmul.f32 %v1432, %v1434
        %v1436 = vadd.f32 %v1432, %v1435
        %vm1437 = vweird.f32 %v1415
        %vm1438 = vweird.f32 %v1432
        %vm1439 = vmor %vm1437, %vm1438
        %v1440 = vsel %vm1439, %v1432, %v1436
        %v1441 = vand.u32 2147483647, %v1415
        %vm1442 = vcmp.eq.f32.partialorder %v1441, 8.507059e+37
        %v1443 = vand.u32 %v1415, 2147483648
        %v1444 = vor.u32 1.1754944e-38, %v1443
        %v1445 = vsel %vm1442, %v1444, %v1440
        %v1446 = vmul.f32 1.0, %v1445
        %v1447 = vrcp.pop %v1416
        %v1448 = vmul.f32 %v1416, %v1447
        %v1449 = vsub.f32 1.0, %v1448
        %v1450 = vmul.f32 %v1447, %v1449
        %v1451 = vadd.f32 %v1447, %v1450
        %vm1452 = vweird.f32 %v1416
        %vm1453 = vweird.f32 %v1447
        %vm1454 = vmor %vm1452, %vm1453
        %v1455 = vsel %vm1454, %v1447, %v1451
        %v1456 = vand.u32 2147483647, %v1416
        %vm1457 = vcmp.eq.f32.partialorder %v1456, 8.507059e+37
        %v1458 = vand.u32 %v1416, 2147483648
        %v1459 = vor.u32 1.1754944e-38, %v1458
        %v1460 = vsel %vm1457, %v1459, %v1455
        %v1461 = vmul.f32 1.0, %v1460
        %v1462 = vtanh.pop %v1404
        %v1463 = vmul.f32 %v1446, %v1313
        %v1464 = vmul.f32 %v1431, %v1462
        %v1465 = vadd.f32 %v1463, %v1464
        %v1466 = vtanh.pop %v1465
        %v1467 = vmul.f32 %v1461, %v1466
        %s1468 = sadd.s32 %s1303, 4
        %p1469 = scmp.lt.s32.totalorder %s1468, 8
        %s1470 = scalar_select %p1469, 1, 0
        %s1471 = scvt.s32.f32 %s1470
        %v1472 = vstv %s1471
        %v1473 = vmul.f32 %v1465, %v1472
        %s1474 = ssub.f32 1.0, %s1471
        %v1475 = vstv %s1474
        %v1476 = vmul.f32 %v1313, %v1475
        %v1477 = vadd.f32 %v1473, %v1476
        %v1478 = vmul.f32 %v1467, %v1472
        %v1479 = vmul.f32 %v1316, %v1475
        %v1480 = vadd.f32 %v1478, %v1479
        %1481 = vst [vmem:[#allocation2] sm:$0xff] %v1480
        %1482 = vst [vmem:[#allocation3] sm:$0xff] %v1477
        %p1483 = scmp.eq.s32.totalorder %s25, 1
        // Predicated region
        $region53: #{tpu_custom_call.1} parent=43 // pred_check
          %p1484 = pneg %p1483
        $region54: #{tpu_custom_call.1} parent=43 // pred_check_branch
          %1486 = sbr.rel (%p1484) target = $region56
        $region55: #{tpu_custom_call.1} parent=43 // pred_region
          %v1487 = vld [vmem:[%s4] sm:$0x1]
          %v1489 = vperm.slane %v1487, 0
          %v1491 = vmul.f32 %v1480, %v1489
          %1492 = vadd.xlane.f32.xlu0 %v1491
          %v1493 = vpop.xlane.xlu0 %1492
          %v1494 = vld [vmem:[#allocation5] sm:$0x1]
          %v1496 = vperm.slane %v1494, 0
          %v1498 = vadd.f32 %v1493, %v1496
          %vm1499 = vcmask 7168
          %1500 = vst.msk [vmem:[%s294] sm:$0xff] %vm1499, %v1498
        $region56: #{tpu_custom_call.1} parent=43 // pred_fallthru
          _
        %p1501 = scmp.lt.s32.totalorder %s24, 0
        %s1502 = scalar_select %p1501, %s24, 0
        %s1503 = smul.addr %s1502, 8
        %s1504 = scalar_lea.vmem %s6, %s1503
        // Predicated region
        $region57: #{tpu_custom_call.1} parent=43 // pred_check
          %p1505 = pneg %p183
        $region58: #{tpu_custom_call.1} parent=43 // pred_check_branch
          %1507 = sbr.rel (%p1505) target = $region60
        $region59: #{tpu_custom_call.1} parent=43 // pred_region
          _
        $region60: #{tpu_custom_call.1} parent=43 // pred_fallthru
          _
        // Predicated region
        $region61: #{tpu_custom_call.1} parent=43 // pred_check
          %p1508 = pneg %p183
        $region62: #{tpu_custom_call.1} parent=43 // pred_check_branch
          %1510 = sbr.rel (%p1508) target = $region64
        $region63: #{tpu_custom_call.1} parent=43 // pred_region
          %p1511 = scmp.lt.s32.totalorder %s24, 0
          %s1512 = scalar_select %p1511, %s24, 0
          %s1513 = smul.addr %s1512, 8
          %s1514 = scalar_lea.vmem %s6, %s1513
        $region64: #{tpu_custom_call.1} parent=43 // pred_fallthru
          _
      $region44: #{tpu_custom_call.1} parent=5 // pred_fallthru
        _
      %p1515 = scmp.le.s32.totalorder 2, %s15
      // Predicated region
      $region65: #{tpu_custom_call.1} parent=5 // pred_check
        %p1516 = pneg %p1515
      $region66: #{tpu_custom_call.1} parent=5 // pred_check_branch
        %1518 = sbr.rel (%p1516) target = $region68
      $region67: #{tpu_custom_call.1} parent=5 // pred_region
        %s1519 = ssub.s32 %s15, 2
      $region68: #{tpu_custom_call.1} parent=5 // pred_fallthru
        _
    $region6: #{tpu_custom_call.1} parent=1 // loop_footer
      %s19 = sadd.s32 1, %s15
    $region7: #{tpu_custom_call.1} parent=1 // loop_footer_branch
      %14 = sbr.rel target = $region3
    $region8: #{tpu_custom_call.1} parent=1 // loop_exit
      _
    %1520 = vsyncpa [#allocation7], 1
    %s1521 = scalar_lea.sflag [#allocation7], 1
    %1522 = vsyncpa %s1521, 1

</llo_original>
